<compile_context>
chip_gen: v7x
topology: tpu7x:2x2x1
jax: 0.10.0
libtpu: 0.0.40
codegen_flags: <defaults>
</compile_context>

<pallas_src>
import jax
import jax.numpy as jnp
from jax.experimental import pallas as pl
from jax.experimental.pallas import tpu as pltpu

MAX_NUM_REACTANTS = 5
_LANE = 128
_SUBLANE = 8


def _cdiv(a, b):
    return (a + b - 1) // b


def _round_up(x, m):
    return _cdiv(x, m) * m


def _pad2(a, rows, cols):
    return jnp.pad(a, ((0, rows - a.shape[0]), (0, cols - a.shape[1])))


def _ffn_head_kernel(ctx_ref, react_ref,
                     w0c_ref, w0r_ref, b0_ref,
                     w1_ref, b1_ref,
                     w2_ref, b2_ref,
                     wo_ref, bo_ref,
                     o_ref):
    """One batch tile: shared MLP over all MAX_NUM_REACTANTS slots.

    ctx_ref   : (tb, ctx_p)        bf16   reaction context (FP_inputs ++ a_inputs)
    react_ref : (R, tb, fp_p)      bf16   per-slot reactant fingerprints
    o_ref     : (tb, R*out_p)      f32    lane-dense output slab
    """
    R, tb, fp_p = react_ref.shape
    h_p = w1_ref.shape[0]
    out_p = wo_ref.shape[1]

    # Layer 0, context half: computed ONCE per batch tile, shared by all R slots.
    h_ctx = (jnp.dot(ctx_ref[...], w0c_ref[...],
                     preferred_element_type=jnp.float32)
             + b0_ref[...])                                        # (tb, h_p)

    # Layer 0, reactant half: all R slots stacked into one (R*tb, fp_p) matmul.
    x_r = react_ref[...].reshape(R * tb, fp_p)
    h = jnp.dot(x_r, w0r_ref[...], preferred_element_type=jnp.float32)
    h = jnp.maximum(h.reshape(R, tb, h_p) + h_ctx[None], 0.0)      # bias in h_ctx
    h = h.reshape(R * tb, h_p)

    # Hidden layers (bias + ReLU in f32 on the VPU; bf16 only at the MXU input).
    h = jnp.dot(h.astype(w1_ref.dtype), w1_ref[...],
                preferred_element_type=jnp.float32)
    h = jnp.maximum(h + b1_ref[...], 0.0)

    h = jnp.dot(h.astype(w2_ref.dtype), w2_ref[...],
                preferred_element_type=jnp.float32)
    h = jnp.maximum(h + b2_ref[...], 0.0)

    out = (jnp.dot(h.astype(wo_ref.dtype), wo_ref[...],
                   preferred_element_type=jnp.float32)
           + bo_ref[...])                                          # (R*tb, out_p)
    out = out.reshape(R, tb, out_p).astype(o_ref.dtype)

    # Lane-dense output slab: slot r occupies columns [r*out_p, (r+1)*out_p).
    for r in range(R):                                             # static unroll
        o_ref[:, r * out_p:(r + 1) * out_p] = out[r]


def init_params(key, fp_dim, agent_input_dim, output_dim, hidden_dim, n_blocks=3):
    """Synthetic parameters matching the PyTorch layer shapes.

    Weights stored as (in_features, out_features); biases as (1, out_features).
    """
    # TODO(synk): kernel is specialized to n_blocks=3 (the module default).
    assert n_blocks == 3, "kernel is specialized for n_blocks=3"
    d_in = fp_dim * 3 + agent_input_dim
    dims = [(d_in, hidden_dim), (hidden_dim, hidden_dim),
            (hidden_dim, hidden_dim), (hidden_dim, output_dim)]
    params = []
    for i, (din, dout) in enumerate(dims):
        kw, kb, key = jax.random.split(jax.random.fold_in(key, i), 3)
        scale = 1.0 / jnp.sqrt(jnp.float32(din))
        w = jax.random.uniform(kw, (din, dout), jnp.float32, -scale, scale)
        b = jax.random.uniform(kb, (1, dout), jnp.float32, -scale, scale)
        params += [w, b]
    return params


def prepare_params(params, fp_dim, agent_input_dim, hidden_dim, output_dim):
    """Split W0 into (context, reactant) halves, pad features to 128-lane
    multiples, cast weights to bf16 (biases stay f32). Pure layout plumbing."""
    w0, b0, w1, b1, w2, b2, wo, bo = params
    ctx_dim = 2 * fp_dim + agent_input_dim
    ctx_p = _round_up(ctx_dim, _LANE)
    fp_p = _round_up(fp_dim, _LANE)
    h_p = _round_up(hidden_dim, _LANE)
    out_p = _round_up(output_dim, _LANE)

    w0c = _pad2(w0[:ctx_dim], ctx_p, h_p).astype(jnp.bfloat16)
    w0r = _pad2(w0[ctx_dim:], fp_p, h_p).astype(jnp.bfloat16)
    w1p = _pad2(w1, h_p, h_p).astype(jnp.bfloat16)
    w2p = _pad2(w2, h_p, h_p).astype(jnp.bfloat16)
    wop = _pad2(wo, h_p, out_p).astype(jnp.bfloat16)
    b0p = _pad2(b0, 1, h_p).astype(jnp.float32)
    b1p = _pad2(b1, 1, h_p).astype(jnp.float32)
    b2p = _pad2(b2, 1, h_p).astype(jnp.float32)
    bop = _pad2(bo, 1, out_p).astype(jnp.float32)
    return (w0c, w0r, b0p, w1p, b1p, w2p, b2p, wop, bop)


def ffn_reactant_amount_head_forward(FP_inputs, a_inputs, FP_reactants,
                                     prepared_params, output_dim, *, tile_b=512):
    """Forward pass. Returns (B, MAX_NUM_REACTANTS, output_dim) float32."""
    B = FP_inputs.shape[0]
    fp_dim = FP_reactants.shape[-1]
    R = MAX_NUM_REACTANTS
    w0c, w0r, b0, w1, b1, w2, b2, wo, bo = prepared_params
    ctx_p, h_p = w0c.shape
    fp_p = w0r.shape[0]
    out_p = wo.shape[1]

    weight_bytes = sum(int(p.size) * p.dtype.itemsize for p in prepared_params)

    def tile_bytes(tb):
        # double-buffered input/output tiles + in-kernel f32 activations (rough)
        return (2 * tb * ctx_p * 2 + 2 * R * tb * fp_p * 2
                + 2 * tb * R * out_p * 4 + 4 * R * tb * h_p * 4)

    try:
        vmem_cap = pltpu.get_tpu_info().vmem_capacity_bytes
    except Exception:
        vmem_cap = 64 * 1024 * 1024     # conservative: v7x per-TensorCore VMEM
    budget = int(0.7 * vmem_cap)

    # Balanced batch tiles; >=2 tiles when B allows (use both TCs on v7x);
    # shrink tb until weights + tiles fit the VMEM budget.
    n_tiles = max(_cdiv(B, tile_b), 2 if B >= 2 * _SUBLANE else 1)
    tb = _round_up(_cdiv(B, n_tiles), _SUBLANE)
    while tb > _SUBLANE and weight_bytes + tile_bytes(tb) > budget:
        tb = _round_up(_cdiv(tb, 2), _SUBLANE)
    # TODO(synk): if the weights alone exceed the VMEM budget (very large hidden
    # dims), they should be streamed through an extra grid axis instead of being
    # kept resident; not needed for this module's typical sizes.
    b_p = _cdiv(B, tb) * tb
    n_tiles = b_p // tb

    # --- glue (plain JAX): concat + pad + cast; the 5x broadcast is NOT materialized.
    ctx = jnp.concatenate([FP_inputs, a_inputs], axis=1).astype(jnp.bfloat16)
    ctx = jnp.pad(ctx, ((0, b_p - B), (0, ctx_p - ctx.shape[1])))
    react = jnp.transpose(FP_reactants.astype(jnp.bfloat16), (1, 0, 2))  # (R, B, fp)
    react = jnp.pad(react, ((0, 0), (0, b_p - B), (0, fp_p - fp_dim)))

    def _resident(shape, single_buffer):
        idx = lambda i, _n=len(shape): (0,) * _n
        if single_buffer:
            try:
                return pl.BlockSpec(shape, idx, pipeline_mode=pl.Buffered(1))
            except TypeError:
                pass
        return pl.BlockSpec(shape, idx)

    flops = (2 * b_p * ctx_p * h_p
             + 2 * b_p * R * (fp_p * h_p + 2 * h_p * h_p + h_p * out_p))
    bytes_accessed = (int(ctx.size) * 2 + int(react.size) * 2
                      + weight_bytes + b_p * R * out_p * 4)

    def _call(single_buffer):
        in_specs = [
            pl.BlockSpec((tb, ctx_p), lambda i: (i, 0)),        # ctx tile
            pl.BlockSpec((R, tb, fp_p), lambda i: (0, i, 0)),   # all reactant slots
            _resident((ctx_p, h_p), single_buffer),   # w0c
            _resident((fp_p, h_p), single_buffer),    # w0r
            _resident((1, h_p), single_buffer),       # b0
            _resident((h_p, h_p), single_buffer),     # w1
            _resident((1, h_p), single_buffer),       # b1
            _resident((h_p, h_p), single_buffer),     # w2
            _resident((1, h_p), single_buffer),       # b2
            _resident((h_p, out_p), single_buffer),   # wo
            _resident((1, out_p), single_buffer),     # bo
        ]
        grid_spec = pltpu.PrefetchScalarGridSpec(
            num_scalar_prefetch=0,
            grid=(n_tiles,),
            in_specs=in_specs,
            out_specs=pl.BlockSpec((tb, R * out_p), lambda i: (i, 0)),
        )
        needed = weight_bytes * (1 if single_buffer else 2) + tile_bytes(tb)
        vmem_limit = int(min(max(needed + (8 << 20), 32 << 20),
                             int(0.9 * vmem_cap)))
        return pl.pallas_call(
            _ffn_head_kernel,
            out_shape=jax.ShapeDtypeStruct((b_p, R * out_p), jnp.float32),
            grid_spec=grid_spec,
            compiler_params=pltpu.CompilerParams(
                dimension_semantics=("parallel",),
                vmem_limit_bytes=vmem_limit,
            ),
            cost_estimate=pl.CostEstimate(flops=int(flops), transcendentals=0,
                                          bytes_accessed=int(bytes_accessed)),
        )(ctx, react, *prepared_params)

    try:
        out = _call(True)      # single-buffered resident weights (v7x VMEM)
    except Exception:
        out = _call(False)     # fallback: default double-buffering

    # (b_p, R*out_p) -> (B, R, output_dim): pure reshape + slice, no transpose.
    return out.reshape(b_p, R, out_p)[:B, :, :output_dim]


def reference_forward(FP_inputs, a_inputs, FP_reactants, params, output_dim):
    """Plain-JAX reference with the same bf16-matmul / f32-accumulate recipe."""
    B = FP_inputs.shape[0]
    ctx = jnp.concatenate([FP_inputs, a_inputs], axis=1)
    ctx = jnp.broadcast_to(ctx[:, None, :],
                           (B, MAX_NUM_REACTANTS, ctx.shape[-1]))
    x = jnp.concatenate([ctx, FP_reactants], axis=2)
    h = x.reshape(-1, x.shape[-1])
    for i in range(3):
        w, b = params[2 * i], params[2 * i + 1]
        h = jnp.maximum(
            jnp.dot(h.astype(jnp.bfloat16), w.astype(jnp.bfloat16),
                    preferred_element_type=jnp.float32) + b, 0.0)
    w, b = params[6], params[7]
    out = jnp.dot(h.astype(jnp.bfloat16), w.astype(jnp.bfloat16),
                  preferred_element_type=jnp.float32) + b
    return out.reshape(B, MAX_NUM_REACTANTS, output_dim)


if __name__ == "__main__":
    # TODO(synk): dropout inside FFNBase omitted (inference/eval semantics).
    B = 2
    fp_dim = 16
    agent_input_dim = 8
    output_dim = 12
    hidden_dim = 32

    key = jax.random.PRNGKey(0)
    k1, k2, k3, kp = jax.random.split(key, 4)

    FP_inputs = jax.random.normal(k1, (B, 2 * fp_dim), jnp.float32)
    a_inputs = jax.random.normal(k2, (B, agent_input_dim), jnp.float32)
    FP_reactants = jax.random.normal(k3, (B, MAX_NUM_REACTANTS, fp_dim), jnp.float32)

    params = init_params(kp, fp_dim, agent_input_dim, output_dim, hidden_dim)
    prepared = prepare_params(params, fp_dim, agent_input_dim, hidden_dim, output_dim)

    out = ffn_reactant_amount_head_forward(FP_inputs, a_inputs, FP_reactants,
                                           prepared, output_dim)
    out = jax.block_until_ready(out)

    ref = reference_forward(FP_inputs, a_inputs, FP_reactants, params, output_dim)

    assert out.shape == (B, MAX_NUM_REACTANTS, output_dim), out.shape
    assert jnp.allclose(out, ref, atol=1e-2, rtol=1e-2), (
        float(jnp.max(jnp.abs(out - ref))))
    print("KERNEL_OK")
</pallas_src>

<mosaic_0001>
module attributes {stable_mosaic.version = 11 : i64} {
  func.func @_ffn_head_kernel(%arg0: i32, %arg1: memref<8x128xbf16, #tpu.memory_space<vmem>>, %arg2: memref<5x8x128xbf16, #tpu.memory_space<vmem>>, %arg3: memref<128x128xbf16, #tpu.memory_space<vmem>>, %arg4: memref<128x128xbf16, #tpu.memory_space<vmem>>, %arg5: memref<1x128xf32, #tpu.memory_space<vmem>>, %arg6: memref<128x128xbf16, #tpu.memory_space<vmem>>, %arg7: memref<1x128xf32, #tpu.memory_space<vmem>>, %arg8: memref<128x128xbf16, #tpu.memory_space<vmem>>, %arg9: memref<1x128xf32, #tpu.memory_space<vmem>>, %arg10: memref<128x128xbf16, #tpu.memory_space<vmem>>, %arg11: memref<1x128xf32, #tpu.memory_space<vmem>>, %arg12: memref<8x640xf32, #tpu.memory_space<vmem>>) attributes {dimension_semantics = [#tpu.dimension_semantics<parallel>], iteration_bounds = array<i64: 1>, scalar_prefetch = 0 : i64, scratch_operands = 0 : i64, tpu.core_type = #tpu.core_type<tc>, window_params = [{transform_indices = @transform_0, window_bounds = array<i64: 8, 128>}, {transform_indices = @transform_1, window_bounds = array<i64: 5, 8, 128>}, {pipeline_mode = #tpu.pipeline_mode<synchronous>, transform_indices = @transform_2, window_bounds = array<i64: 128, 128>}, {pipeline_mode = #tpu.pipeline_mode<synchronous>, transform_indices = @transform_3, window_bounds = array<i64: 128, 128>}, {pipeline_mode = #tpu.pipeline_mode<synchronous>, transform_indices = @transform_4, window_bounds = array<i64: 1, 128>}, {pipeline_mode = #tpu.pipeline_mode<synchronous>, transform_indices = @transform_5, window_bounds = array<i64: 128, 128>}, {pipeline_mode = #tpu.pipeline_mode<synchronous>, transform_indices = @transform_6, window_bounds = array<i64: 1, 128>}, {pipeline_mode = #tpu.pipeline_mode<synchronous>, transform_indices = @transform_7, window_bounds = array<i64: 128, 128>}, {pipeline_mode = #tpu.pipeline_mode<synchronous>, transform_indices = @transform_8, window_bounds = array<i64: 1, 128>}, {pipeline_mode = #tpu.pipeline_mode<synchronous>, transform_indices = @transform_9, window_bounds = array<i64: 128, 128>}, {pipeline_mode = #tpu.pipeline_mode<synchronous>, transform_indices = @transform_10, window_bounds = array<i64: 1, 128>}, {transform_indices = @transform_11, window_bounds = array<i64: 8, 640>}]} {
    %c0 = arith.constant 0 : index
    %c0_0 = arith.constant 0 : index
    %0 = vector.load %arg1[%c0, %c0_0] : memref<8x128xbf16, #tpu.memory_space<vmem>>, vector<8x128xbf16>
    %c0_1 = arith.constant 0 : index
    %c0_2 = arith.constant 0 : index
    %1 = vector.load %arg3[%c0_1, %c0_2] : memref<128x128xbf16, #tpu.memory_space<vmem>>, vector<128x128xbf16>
    %cst = arith.constant dense<0.000000e+00> : vector<8x128xf32>
    %2 = tpu.matmul %0, %1, %cst {dimension_numbers = #tpu.dot_dimension_numbers<[1], [0], [0], [1], [0, 0, 1, 1], [], []>} : vector<8x128xbf16>, vector<128x128xbf16>, vector<8x128xf32> -> vector<8x128xf32>
    %c0_3 = arith.constant 0 : index
    %c0_4 = arith.constant 0 : index
    %3 = vector.load %arg5[%c0_3, %c0_4] : memref<1x128xf32, #tpu.memory_space<vmem>>, vector<1x128xf32>
    %4 = vector.broadcast %3 : vector<1x128xf32> to vector<8x128xf32>
    %5 = arith.addf %2, %4 : vector<8x128xf32>
    %c0_5 = arith.constant 0 : index
    %c0_6 = arith.constant 0 : index
    %c0_7 = arith.constant 0 : index
    %6 = vector.load %arg2[%c0_5, %c0_6, %c0_7] : memref<5x8x128xbf16, #tpu.memory_space<vmem>>, vector<5x8x128xbf16>
    %7 = vector.shape_cast %6 : vector<5x8x128xbf16> to vector<40x128xbf16>
    %c0_8 = arith.constant 0 : index
    %c0_9 = arith.constant 0 : index
    %8 = vector.load %arg4[%c0_8, %c0_9] : memref<128x128xbf16, #tpu.memory_space<vmem>>, vector<128x128xbf16>
    %cst_10 = arith.constant dense<0.000000e+00> : vector<40x128xf32>
    %9 = tpu.matmul %7, %8, %cst_10 {dimension_numbers = #tpu.dot_dimension_numbers<[1], [0], [0], [1], [0, 0, 1, 1], [], []>} : vector<40x128xbf16>, vector<128x128xbf16>, vector<40x128xf32> -> vector<40x128xf32>
    %10 = vector.shape_cast %9 : vector<40x128xf32> to vector<5x8x128xf32>
    %11 = vector.shape_cast %5 : vector<8x128xf32> to vector<1x8x128xf32>
    %12 = vector.broadcast %11 : vector<1x8x128xf32> to vector<5x8x128xf32>
    %13 = arith.addf %10, %12 : vector<5x8x128xf32>
    %cst_11 = arith.constant 0.000000e+00 : f32
    %14 = vector.broadcast %cst_11 : f32 to vector<5x8x128xf32>
    %15 = arith.maximumf %13, %14 : vector<5x8x128xf32>
    %16 = vector.shape_cast %15 : vector<5x8x128xf32> to vector<40x128xf32>
    %17 = arith.truncf %16 : vector<40x128xf32> to vector<40x128xbf16>
    %c0_12 = arith.constant 0 : index
    %c0_13 = arith.constant 0 : index
    %18 = vector.load %arg6[%c0_12, %c0_13] : memref<128x128xbf16, #tpu.memory_space<vmem>>, vector<128x128xbf16>
    %cst_14 = arith.constant dense<0.000000e+00> : vector<40x128xf32>
    %19 = tpu.matmul %17, %18, %cst_14 {dimension_numbers = #tpu.dot_dimension_numbers<[1], [0], [0], [1], [0, 0, 1, 1], [], []>} : vector<40x128xbf16>, vector<128x128xbf16>, vector<40x128xf32> -> vector<40x128xf32>
    %c0_15 = arith.constant 0 : index
    %c0_16 = arith.constant 0 : index
    %20 = vector.load %arg7[%c0_15, %c0_16] : memref<1x128xf32, #tpu.memory_space<vmem>>, vector<1x128xf32>
    %21 = vector.broadcast %20 : vector<1x128xf32> to vector<40x128xf32>
    %22 = arith.addf %19, %21 : vector<40x128xf32>
    %cst_17 = arith.constant 0.000000e+00 : f32
    %23 = vector.broadcast %cst_17 : f32 to vector<40x128xf32>
    %24 = arith.maximumf %22, %23 : vector<40x128xf32>
    %25 = arith.truncf %24 : vector<40x128xf32> to vector<40x128xbf16>
    %c0_18 = arith.constant 0 : index
    %c0_19 = arith.constant 0 : index
    %26 = vector.load %arg8[%c0_18, %c0_19] : memref<128x128xbf16, #tpu.memory_space<vmem>>, vector<128x128xbf16>
    %cst_20 = arith.constant dense<0.000000e+00> : vector<40x128xf32>
    %27 = tpu.matmul %25, %26, %cst_20 {dimension_numbers = #tpu.dot_dimension_numbers<[1], [0], [0], [1], [0, 0, 1, 1], [], []>} : vector<40x128xbf16>, vector<128x128xbf16>, vector<40x128xf32> -> vector<40x128xf32>
    %c0_21 = arith.constant 0 : index
    %c0_22 = arith.constant 0 : index
    %28 = vector.load %arg9[%c0_21, %c0_22] : memref<1x128xf32, #tpu.memory_space<vmem>>, vector<1x128xf32>
    %29 = vector.broadcast %28 : vector<1x128xf32> to vector<40x128xf32>
    %30 = arith.addf %27, %29 : vector<40x128xf32>
    %cst_23 = arith.constant 0.000000e+00 : f32
    %31 = vector.broadcast %cst_23 : f32 to vector<40x128xf32>
    %32 = arith.maximumf %30, %31 : vector<40x128xf32>
    %33 = arith.truncf %32 : vector<40x128xf32> to vector<40x128xbf16>
    %c0_24 = arith.constant 0 : index
    %c0_25 = arith.constant 0 : index
    %34 = vector.load %arg10[%c0_24, %c0_25] : memref<128x128xbf16, #tpu.memory_space<vmem>>, vector<128x128xbf16>
    %cst_26 = arith.constant dense<0.000000e+00> : vector<40x128xf32>
    %35 = tpu.matmul %33, %34, %cst_26 {dimension_numbers = #tpu.dot_dimension_numbers<[1], [0], [0], [1], [0, 0, 1, 1], [], []>} : vector<40x128xbf16>, vector<128x128xbf16>, vector<40x128xf32> -> vector<40x128xf32>
    %c0_27 = arith.constant 0 : index
    %c0_28 = arith.constant 0 : index
    %36 = vector.load %arg11[%c0_27, %c0_28] : memref<1x128xf32, #tpu.memory_space<vmem>>, vector<1x128xf32>
    %37 = vector.broadcast %36 : vector<1x128xf32> to vector<40x128xf32>
    %38 = arith.addf %35, %37 : vector<40x128xf32>
    %39 = vector.shape_cast %38 : vector<40x128xf32> to vector<5x8x128xf32>
    %40 = vector.extract_strided_slice %39 {offsets = [0, 0, 0], sizes = [1, 8, 128], strides = [1, 1, 1]} : vector<5x8x128xf32> to vector<1x8x128xf32>
    %41 = vector.shape_cast %40 : vector<1x8x128xf32> to vector<8x128xf32>
    %c0_29 = arith.constant 0 : index
    %c0_30 = arith.constant 0 : index
    %42 = vector.load %arg12[%c0_29, %c0_30] : memref<8x640xf32, #tpu.memory_space<vmem>>, vector<8x128xf32>
    tpu.vector_store %arg12[%c0_29, %c0_30], %41 {strides = array<i32>} : memref<8x640xf32, #tpu.memory_space<vmem>>, vector<8x128xf32>,
    %43 = vector.extract_strided_slice %39 {offsets = [1, 0, 0], sizes = [1, 8, 128], strides = [1, 1, 1]} : vector<5x8x128xf32> to vector<1x8x128xf32>
    %44 = vector.shape_cast %43 : vector<1x8x128xf32> to vector<8x128xf32>
    %c0_31 = arith.constant 0 : index
    %c128 = arith.constant 128 : index
    %45 = vector.load %arg12[%c0_31, %c128] : memref<8x640xf32, #tpu.memory_space<vmem>>, vector<8x128xf32>
    tpu.vector_store %arg12[%c0_31, %c128], %44 {strides = array<i32>} : memref<8x640xf32, #tpu.memory_space<vmem>>, vector<8x128xf32>,
    %46 = vector.extract_strided_slice %39 {offsets = [2, 0, 0], sizes = [1, 8, 128], strides = [1, 1, 1]} : vector<5x8x128xf32> to vector<1x8x128xf32>
    %47 = vector.shape_cast %46 : vector<1x8x128xf32> to vector<8x128xf32>
    %c0_32 = arith.constant 0 : index
    %c256 = arith.constant 256 : index
    %48 = vector.load %arg12[%c0_32, %c256] : memref<8x640xf32, #tpu.memory_space<vmem>>, vector<8x128xf32>
    tpu.vector_store %arg12[%c0_32, %c256], %47 {strides = array<i32>} : memref<8x640xf32, #tpu.memory_space<vmem>>, vector<8x128xf32>,
    %49 = vector.extract_strided_slice %39 {offsets = [3, 0, 0], sizes = [1, 8, 128], strides = [1, 1, 1]} : vector<5x8x128xf32> to vector<1x8x128xf32>
    %50 = vector.shape_cast %49 : vector<1x8x128xf32> to vector<8x128xf32>
    %c0_33 = arith.constant 0 : index
    %c384 = arith.constant 384 : index
    %51 = vector.load %arg12[%c0_33, %c384] : memref<8x640xf32, #tpu.memory_space<vmem>>, vector<8x128xf32>
    tpu.vector_store %arg12[%c0_33, %c384], %50 {strides = array<i32>} : memref<8x640xf32, #tpu.memory_space<vmem>>, vector<8x128xf32>,
    %52 = vector.extract_strided_slice %39 {offsets = [4, 0, 0], sizes = [1, 8, 128], strides = [1, 1, 1]} : vector<5x8x128xf32> to vector<1x8x128xf32>
    %53 = vector.shape_cast %52 : vector<1x8x128xf32> to vector<8x128xf32>
    %c0_34 = arith.constant 0 : index
    %c512 = arith.constant 512 : index
    %54 = vector.load %arg12[%c0_34, %c512] : memref<8x640xf32, #tpu.memory_space<vmem>>, vector<8x128xf32>
    tpu.vector_store %arg12[%c0_34, %c512], %53 {strides = array<i32>} : memref<8x640xf32, #tpu.memory_space<vmem>>, vector<8x128xf32>,
    return
  }
  func.func @transform_0(%arg0: i32) -> (i32, i32) {
    %c0_i32 = arith.constant 0 : i32
    %c0_i32_0 = arith.constant 0 : i32
    return %arg0, %c0_i32 : i32, i32
  }
  func.func @transform_1(%arg0: i32) -> (i32, i32, i32) {
    %c0_i32 = arith.constant 0 : i32
    %c0_i32_0 = arith.constant 0 : i32
    %c0_i32_1 = arith.constant 0 : i32
    return %c0_i32, %arg0, %c0_i32_0 : i32, i32, i32
  }
  func.func @transform_2(%arg0: i32) -> (i32, i32) {
    %c0_i32 = arith.constant 0 : i32
    %c0_i32_0 = arith.constant 0 : i32
    %c0_i32_1 = arith.constant 0 : i32
    return %c0_i32, %c0_i32_0 : i32, i32
  }
  func.func @transform_3(%arg0: i32) -> (i32, i32) {
    %c0_i32 = arith.constant 0 : i32
    %c0_i32_0 = arith.constant 0 : i32
    %c0_i32_1 = arith.constant 0 : i32
    return %c0_i32, %c0_i32_0 : i32, i32
  }
  func.func @transform_4(%arg0: i32) -> (i32, i32) {
    %c0_i32 = arith.constant 0 : i32
    %c0_i32_0 = arith.constant 0 : i32
    %c0_i32_1 = arith.constant 0 : i32
    return %c0_i32, %c0_i32_0 : i32, i32
  }
  func.func @transform_5(%arg0: i32) -> (i32, i32) {
    %c0_i32 = arith.constant 0 : i32
    %c0_i32_0 = arith.constant 0 : i32
    %c0_i32_1 = arith.constant 0 : i32
    return %c0_i32, %c0_i32_0 : i32, i32
  }
  func.func @transform_6(%arg0: i32) -> (i32, i32) {
    %c0_i32 = arith.constant 0 : i32
    %c0_i32_0 = arith.constant 0 : i32
    %c0_i32_1 = arith.constant 0 : i32
    return %c0_i32, %c0_i32_0 : i32, i32
  }
  func.func @transform_7(%arg0: i32) -> (i32, i32) {
    %c0_i32 = arith.constant 0 : i32
    %c0_i32_0 = arith.constant 0 : i32
    %c0_i32_1 = arith.constant 0 : i32
    return %c0_i32, %c0_i32_0 : i32, i32
  }
  func.func @transform_8(%arg0: i32) -> (i32, i32) {
    %c0_i32 = arith.constant 0 : i32
    %c0_i32_0 = arith.constant 0 : i32
    %c0_i32_1 = arith.constant 0 : i32
    return %c0_i32, %c0_i32_0 : i32, i32
  }
  func.func @transform_9(%arg0: i32) -> (i32, i32) {
    %c0_i32 = arith.constant 0 : i32
    %c0_i32_0 = arith.constant 0 : i32
    %c0_i32_1 = arith.constant 0 : i32
    return %c0_i32, %c0_i32_0 : i32, i32
  }
  func.func @transform_10(%arg0: i32) -> (i32, i32) {
    %c0_i32 = arith.constant 0 : i32
    %c0_i32_0 = arith.constant 0 : i32
    %c0_i32_1 = arith.constant 0 : i32
    return %c0_i32, %c0_i32_0 : i32, i32
  }
  func.func @transform_11(%arg0: i32) -> (i32, i32) {
    %c0_i32 = arith.constant 0 : i32
    %c0_i32_0 = arith.constant 0 : i32
    return %arg0, %c0_i32 : i32, i32
  }
}

module attributes {stable_mosaic.version = 11 : i64} {
  func.func @_ffn_head_kernel(%arg0: i32, %arg1: memref<8x128xbf16, #tpu.memory_space<vmem>>, %arg2: memref<5x8x128xbf16, #tpu.memory_space<vmem>>, %arg3: memref<128x128xbf16, #tpu.memory_space<vmem>>, %arg4: memref<128x128xbf16, #tpu.memory_space<vmem>>, %arg5: memref<1x128xf32, #tpu.memory_space<vmem>>, %arg6: memref<128x128xbf16, #tpu.memory_space<vmem>>, %arg7: memref<1x128xf32, #tpu.memory_space<vmem>>, %arg8: memref<128x128xbf16, #tpu.memory_space<vmem>>, %arg9: memref<1x128xf32, #tpu.memory_space<vmem>>, %arg10: memref<128x128xbf16, #tpu.memory_space<vmem>>, %arg11: memref<1x128xf32, #tpu.memory_space<vmem>>, %arg12: memref<8x640xf32, #tpu.memory_space<vmem>>) attributes {dimension_semantics = [#tpu.dimension_semantics<parallel>], iteration_bounds = array<i64: 1>, scalar_prefetch = 0 : i64, scratch_operands = 0 : i64, tpu.core_type = #tpu.core_type<tc>, window_params = [{transform_indices = @transform_0, window_bounds = array<i64: 8, 128>}, {transform_indices = @transform_1, window_bounds = array<i64: 5, 8, 128>}, {pipeline_mode = #tpu.pipeline_mode<synchronous>, transform_indices = @transform_2, window_bounds = array<i64: 128, 128>}, {pipeline_mode = #tpu.pipeline_mode<synchronous>, transform_indices = @transform_3, window_bounds = array<i64: 128, 128>}, {pipeline_mode = #tpu.pipeline_mode<synchronous>, transform_indices = @transform_4, window_bounds = array<i64: 1, 128>}, {pipeline_mode = #tpu.pipeline_mode<synchronous>, transform_indices = @transform_5, window_bounds = array<i64: 128, 128>}, {pipeline_mode = #tpu.pipeline_mode<synchronous>, transform_indices = @transform_6, window_bounds = array<i64: 1, 128>}, {pipeline_mode = #tpu.pipeline_mode<synchronous>, transform_indices = @transform_7, window_bounds = array<i64: 128, 128>}, {pipeline_mode = #tpu.pipeline_mode<synchronous>, transform_indices = @transform_8, window_bounds = array<i64: 1, 128>}, {pipeline_mode = #tpu.pipeline_mode<synchronous>, transform_indices = @transform_9, window_bounds = array<i64: 128, 128>}, {pipeline_mode = #tpu.pipeline_mode<synchronous>, transform_indices = @transform_10, window_bounds = array<i64: 1, 128>}, {transform_indices = @transform_11, window_bounds = array<i64: 8, 640>}]} {
    %c0 = arith.constant 0 : index
    %c0_0 = arith.constant 0 : index
    %0 = vector.load %arg1[%c0, %c0_0] : memref<8x128xbf16, #tpu.memory_space<vmem>>, vector<8x128xbf16>
    %c0_1 = arith.constant 0 : index
    %c0_2 = arith.constant 0 : index
    %1 = vector.load %arg3[%c0_1, %c0_2] : memref<128x128xbf16, #tpu.memory_space<vmem>>, vector<128x128xbf16>
    %cst = arith.constant dense<0.000000e+00> : vector<8x128xf32>
    %2 = tpu.matmul %0, %1, %cst {dimension_numbers = #tpu.dot_dimension_numbers<[1], [0], [0], [1], [0, 0, 1, 1], [], []>} : vector<8x128xbf16>, vector<128x128xbf16>, vector<8x128xf32> -> vector<8x128xf32>
    %c0_3 = arith.constant 0 : index
    %c0_4 = arith.constant 0 : index
    %3 = vector.load %arg5[%c0_3, %c0_4] : memref<1x128xf32, #tpu.memory_space<vmem>>, vector<1x128xf32>
    %4 = vector.broadcast %3 : vector<1x128xf32> to vector<8x128xf32>
    %5 = arith.addf %2, %4 : vector<8x128xf32>
    %c0_5 = arith.constant 0 : index
    %c0_6 = arith.constant 0 : index
    %c0_7 = arith.constant 0 : index
    %6 = vector.load %arg2[%c0_5, %c0_6, %c0_7] : memref<5x8x128xbf16, #tpu.memory_space<vmem>>, vector<5x8x128xbf16>
    %7 = vector.shape_cast %6 : vector<5x8x128xbf16> to vector<40x128xbf16>
    %c0_8 = arith.constant 0 : index
    %c0_9 = arith.constant 0 : index
    %8 = vector.load %arg4[%c0_8, %c0_9] : memref<128x128xbf16, #tpu.memory_space<vmem>>, vector<128x128xbf16>
    %cst_10 = arith.constant dense<0.000000e+00> : vector<40x128xf32>
    %9 = tpu.matmul %7, %8, %cst_10 {dimension_numbers = #tpu.dot_dimension_numbers<[1], [0], [0], [1], [0, 0, 1, 1], [], []>} : vector<40x128xbf16>, vector<128x128xbf16>, vector<40x128xf32> -> vector<40x128xf32>
    %10 = vector.shape_cast %9 : vector<40x128xf32> to vector<5x8x128xf32>
    %11 = vector.shape_cast %5 : vector<8x128xf32> to vector<1x8x128xf32>
    %12 = vector.broadcast %11 : vector<1x8x128xf32> to vector<5x8x128xf32>
    %13 = arith.addf %10, %12 : vector<5x8x128xf32>
    %cst_11 = arith.constant 0.000000e+00 : f32
    %14 = vector.broadcast %cst_11 : f32 to vector<5x8x128xf32>
    %15 = arith.maximumf %13, %14 : vector<5x8x128xf32>
    %16 = vector.shape_cast %15 : vector<5x8x128xf32> to vector<40x128xf32>
    %17 = arith.truncf %16 : vector<40x128xf32> to vector<40x128xbf16>
    %c0_12 = arith.constant 0 : index
    %c0_13 = arith.constant 0 : index
    %18 = vector.load %arg6[%c0_12, %c0_13] : memref<128x128xbf16, #tpu.memory_space<vmem>>, vector<128x128xbf16>
    %cst_14 = arith.constant dense<0.000000e+00> : vector<40x128xf32>
    %19 = tpu.matmul %17, %18, %cst_14 {dimension_numbers = #tpu.dot_dimension_numbers<[1], [0], [0], [1], [0, 0, 1, 1], [], []>} : vector<40x128xbf16>, vector<128x128xbf16>, vector<40x128xf32> -> vector<40x128xf32>
    %c0_15 = arith.constant 0 : index
    %c0_16 = arith.constant 0 : index
    %20 = vector.load %arg7[%c0_15, %c0_16] : memref<1x128xf32, #tpu.memory_space<vmem>>, vector<1x128xf32>
    %21 = vector.broadcast %20 : vector<1x128xf32> to vector<40x128xf32>
    %22 = arith.addf %19, %21 : vector<40x128xf32>
    %cst_17 = arith.constant 0.000000e+00 : f32
    %23 = vector.broadcast %cst_17 : f32 to vector<40x128xf32>
    %24 = arith.maximumf %22, %23 : vector<40x128xf32>
    %25 = arith.truncf %24 : vector<40x128xf32> to vector<40x128xbf16>
    %c0_18 = arith.constant 0 : index
    %c0_19 = arith.constant 0 : index
    %26 = vector.load %arg8[%c0_18, %c0_19] : memref<128x128xbf16, #tpu.memory_space<vmem>>, vector<128x128xbf16>
    %cst_20 = arith.constant dense<0.000000e+00> : vector<40x128xf32>
    %27 = tpu.matmul %25, %26, %cst_20 {dimension_numbers = #tpu.dot_dimension_numbers<[1], [0], [0], [1], [0, 0, 1, 1], [], []>} : vector<40x128xbf16>, vector<128x128xbf16>, vector<40x128xf32> -> vector<40x128xf32>
    %c0_21 = arith.constant 0 : index
    %c0_22 = arith.constant 0 : index
    %28 = vector.load %arg9[%c0_21, %c0_22] : memref<1x128xf32, #tpu.memory_space<vmem>>, vector<1x128xf32>
    %29 = vector.broadcast %28 : vector<1x128xf32> to vector<40x128xf32>
    %30 = arith.addf %27, %29 : vector<40x128xf32>
    %cst_23 = arith.constant 0.000000e+00 : f32
    %31 = vector.broadcast %cst_23 : f32 to vector<40x128xf32>
    %32 = arith.maximumf %30, %31 : vector<40x128xf32>
    %33 = arith.truncf %32 : vector<40x128xf32> to vector<40x128xbf16>
    %c0_24 = arith.constant 0 : index
    %c0_25 = arith.constant 0 : index
    %34 = vector.load %arg10[%c0_24, %c0_25] : memref<128x128xbf16, #tpu.memory_space<vmem>>, vector<128x128xbf16>
    %cst_26 = arith.constant dense<0.000000e+00> : vector<40x128xf32>
    %35 = tpu.matmul %33, %34, %cst_26 {dimension_numbers = #tpu.dot_dimension_numbers<[1], [0], [0], [1], [0, 0, 1, 1], [], []>} : vector<40x128xbf16>, vector<128x128xbf16>, vector<40x128xf32> -> vector<40x128xf32>
    %c0_27 = arith.constant 0 : index
    %c0_28 = arith.constant 0 : index
    %36 = vector.load %arg11[%c0_27, %c0_28] : memref<1x128xf32, #tpu.memory_space<vmem>>, vector<1x128xf32>
    %37 = vector.broadcast %36 : vector<1x128xf32> to vector<40x128xf32>
    %38 = arith.addf %35, %37 : vector<40x128xf32>
    %39 = vector.shape_cast %38 : vector<40x128xf32> to vector<5x8x128xf32>
    %40 = vector.extract_strided_slice %39 {offsets = [0, 0, 0], sizes = [1, 8, 128], strides = [1, 1, 1]} : vector<5x8x128xf32> to vector<1x8x128xf32>
    %41 = vector.shape_cast %40 : vector<1x8x128xf32> to vector<8x128xf32>
    %c0_29 = arith.constant 0 : index
    %c0_30 = arith.constant 0 : index
    %42 = vector.load %arg12[%c0_29, %c0_30] : memref<8x640xf32, #tpu.memory_space<vmem>>, vector<8x128xf32>
    tpu.vector_store %arg12[%c0_29, %c0_30], %41 {strides = array<i32>} : memref<8x640xf32, #tpu.memory_space<vmem>>, vector<8x128xf32>,
    %43 = vector.extract_strided_slice %39 {offsets = [1, 0, 0], sizes = [1, 8, 128], strides = [1, 1, 1]} : vector<5x8x128xf32> to vector<1x8x128xf32>
    %44 = vector.shape_cast %43 : vector<1x8x128xf32> to vector<8x128xf32>
    %c0_31 = arith.constant 0 : index
    %c128 = arith.constant 128 : index
    %45 = vector.load %arg12[%c0_31, %c128] : memref<8x640xf32, #tpu.memory_space<vmem>>, vector<8x128xf32>
    tpu.vector_store %arg12[%c0_31, %c128], %44 {strides = array<i32>} : memref<8x640xf32, #tpu.memory_space<vmem>>, vector<8x128xf32>,
    %46 = vector.extract_strided_slice %39 {offsets = [2, 0, 0], sizes = [1, 8, 128], strides = [1, 1, 1]} : vector<5x8x128xf32> to vector<1x8x128xf32>
    %47 = vector.shape_cast %46 : vector<1x8x128xf32> to vector<8x128xf32>
    %c0_32 = arith.constant 0 : index
    %c256 = arith.constant 256 : index
    %48 = vector.load %arg12[%c0_32, %c256] : memref<8x640xf32, #tpu.memory_space<vmem>>, vector<8x128xf32>
    tpu.vector_store %arg12[%c0_32, %c256], %47 {strides = array<i32>} : memref<8x640xf32, #tpu.memory_space<vmem>>, vector<8x128xf32>,
    %49 = vector.extract_strided_slice %39 {offsets = [3, 0, 0], sizes = [1, 8, 128], strides = [1, 1, 1]} : vector<5x8x128xf32> to vector<1x8x128xf32>
    %50 = vector.shape_cast %49 : vector<1x8x128xf32> to vector<8x128xf32>
    %c0_33 = arith.constant 0 : index
    %c384 = arith.constant 384 : index
    %51 = vector.load %arg12[%c0_33, %c384] : memref<8x640xf32, #tpu.memory_space<vmem>>, vector<8x128xf32>
    tpu.vector_store %arg12[%c0_33, %c384], %50 {strides = array<i32>} : memref<8x640xf32, #tpu.memory_space<vmem>>, vector<8x128xf32>,
    %52 = vector.extract_strided_slice %39 {offsets = [4, 0, 0], sizes = [1, 8, 128], strides = [1, 1, 1]} : vector<5x8x128xf32> to vector<1x8x128xf32>
    %53 = vector.shape_cast %52 : vector<1x8x128xf32> to vector<8x128xf32>
    %c0_34 = arith.constant 0 : index
    %c512 = arith.constant 512 : index
    %54 = vector.load %arg12[%c0_34, %c512] : memref<8x640xf32, #tpu.memory_space<vmem>>, vector<8x128xf32>
    tpu.vector_store %arg12[%c0_34, %c512], %53 {strides = array<i32>} : memref<8x640xf32, #tpu.memory_space<vmem>>, vector<8x128xf32>,
    return
  }
  func.func @transform_0(%arg0: i32) -> (i32, i32) {
    %c0_i32 = arith.constant 0 : i32
    %c0_i32_0 = arith.constant 0 : i32
    return %arg0, %c0_i32 : i32, i32
  }
  func.func @transform_1(%arg0: i32) -> (i32, i32, i32) {
    %c0_i32 = arith.constant 0 : i32
    %c0_i32_0 = arith.constant 0 : i32
    %c0_i32_1 = arith.constant 0 : i32
    return %c0_i32, %arg0, %c0_i32_0 : i32, i32, i32
  }
  func.func @transform_2(%arg0: i32) -> (i32, i32) {
    %c0_i32 = arith.constant 0 : i32
    %c0_i32_0 = arith.constant 0 : i32
    %c0_i32_1 = arith.constant 0 : i32
    return %c0_i32, %c0_i32_0 : i32, i32
  }
  func.func @transform_3(%arg0: i32) -> (i32, i32) {
    %c0_i32 = arith.constant 0 : i32
    %c0_i32_0 = arith.constant 0 : i32
    %c0_i32_1 = arith.constant 0 : i32
    return %c0_i32, %c0_i32_0 : i32, i32
  }
  func.func @transform_4(%arg0: i32) -> (i32, i32) {
    %c0_i32 = arith.constant 0 : i32
    %c0_i32_0 = arith.constant 0 : i32
    %c0_i32_1 = arith.constant 0 : i32
    return %c0_i32, %c0_i32_0 : i32, i32
  }
  func.func @transform_5(%arg0: i32) -> (i32, i32) {
    %c0_i32 = arith.constant 0 : i32
    %c0_i32_0 = arith.constant 0 : i32
    %c0_i32_1 = arith.constant 0 : i32
    return %c0_i32, %c0_i32_0 : i32, i32
  }
  func.func @transform_6(%arg0: i32) -> (i32, i32) {
    %c0_i32 = arith.constant 0 : i32
    %c0_i32_0 = arith.constant 0 : i32
    %c0_i32_1 = arith.constant 0 : i32
    return %c0_i32, %c0_i32_0 : i32, i32
  }
  func.func @transform_7(%arg0: i32) -> (i32, i32) {
    %c0_i32 = arith.constant 0 : i32
    %c0_i32_0 = arith.constant 0 : i32
    %c0_i32_1 = arith.constant 0 : i32
    return %c0_i32, %c0_i32_0 : i32, i32
  }
  func.func @transform_8(%arg0: i32) -> (i32, i32) {
    %c0_i32 = arith.constant 0 : i32
    %c0_i32_0 = arith.constant 0 : i32
    %c0_i32_1 = arith.constant 0 : i32
    return %c0_i32, %c0_i32_0 : i32, i32
  }
  func.func @transform_9(%arg0: i32) -> (i32, i32) {
    %c0_i32 = arith.constant 0 : i32
    %c0_i32_0 = arith.constant 0 : i32
    %c0_i32_1 = arith.constant 0 : i32
    return %c0_i32, %c0_i32_0 : i32, i32
  }
  func.func @transform_10(%arg0: i32) -> (i32, i32) {
    %c0_i32 = arith.constant 0 : i32
    %c0_i32_0 = arith.constant 0 : i32
    %c0_i32_1 = arith.constant 0 : i32
    return %c0_i32, %c0_i32_0 : i32, i32
  }
  func.func @transform_11(%arg0: i32) -> (i32, i32) {
    %c0_i32 = arith.constant 0 : i32
    %c0_i32_0 = arith.constant 0 : i32
    return %arg0, %c0_i32 : i32, i32
  }
}

</mosaic_0001>

<llo_original>
// kernel: tpu_custom_call.1
$region0: #{tpu_custom_call.1}
  #allocation0 [shape = 'u32[]', space=smem, size = 0x4, offset = 0x4, fixed_abs, tag = 'smem constant byte address 0x4 - core index']
  #allocation1 [shape = 'u32[144,128]{1,0:T(1,128)}', space=vmem, size = 0x12000, scoped, tag = 'internal scratch']
  %s0 = inlined_call_operand.hbm [shape: bf16[8,128], index: 0, kind: input, shape index: {}]
  %s1 = inlined_call_operand.hbm [shape: bf16[5,8,128], index: 1, kind: input, shape index: {}]
  %s2 = inlined_call_operand.hbm [shape: bf16[128,128], index: 2, kind: input, shape index: {}]
  %s3 = inlined_call_operand.hbm [shape: bf16[128,128], index: 3, kind: input, shape index: {}]
  %s4 = inlined_call_operand.vmem [shape: f32[1,128], index: 4, kind: input, shape index: {}]
  %s5 = inlined_call_operand.hbm [shape: bf16[128,128], index: 5, kind: input, shape index: {}]
  %s6 = inlined_call_operand.vmem [shape: f32[1,128], index: 6, kind: input, shape index: {}]
  %s7 = inlined_call_operand.hbm [shape: bf16[128,128], index: 7, kind: input, shape index: {}]
  %s8 = inlined_call_operand.vmem [shape: f32[1,128], index: 8, kind: input, shape index: {}]
  %s9 = inlined_call_operand.hbm [shape: bf16[128,128], index: 9, kind: input, shape index: {}]
  %s10 = inlined_call_operand.vmem [shape: f32[1,128], index: 10, kind: input, shape index: {}]
  %s11 = inlined_call_operand.hbm [shape: f32[8,640], index: 11, kind: output, shape index: {}]
  %s12 = sld [smem:[#allocation0]]
  $region82: #{tpu_custom_call.1} parent=0
    _
  %s14 = ssub.s32 1, %s12
  %s15 = scalar_select 0, %s14, %s12
  $region1: #{tpu_custom_call.1} parent=0
    #allocation2 [shape = 'u8[2048]{0}', space=vmem, size = 0x800, scoped, tag = 'input window, operand 0, single buffered']
    #allocation3 [shape = 's32[1]{0}', space=sflag, size = 0x4, scoped, tag = 'scoped memory for tpu_custom_call.1']
    #allocation4 [shape = 's32[1]{0}', space=sflag, size = 0x4, scoped, tag = 'scoped memory for tpu_custom_call.1']
    #allocation5 [shape = 'u8[10240]{0}', space=vmem, size = 0x2800, scoped, tag = 'input window, operand 1, single buffered']
    #allocation6 [shape = 's32[1]{0}', space=sflag, size = 0x4, scoped, tag = 'scoped memory for tpu_custom_call.1']
    #allocation7 [shape = 'u8[32768]{0}', space=vmem, size = 0x8000, scoped, tag = 'input window, operand 2, single buffered']
    #allocation8 [shape = 'u8[32768]{0}', space=vmem, size = 0x8000, scoped, tag = 'input window, operand 3, single buffered']
    #allocation9 [shape = 's32[1]{0}', space=sflag, size = 0x4, scoped, tag = 'scoped memory for tpu_custom_call.1']
    #allocation10 [shape = 'u8[32768]{0}', space=vmem, size = 0x8000, scoped, tag = 'input window, operand 5, single buffered']
    #allocation11 [shape = 'u8[32768]{0}', space=vmem, size = 0x8000, scoped, tag = 'input window, operand 7, single buffered']
    #allocation12 [shape = 's32[1]{0}', space=sflag, size = 0x4, scoped, tag = 'scoped memory for tpu_custom_call.1']
    #allocation13 [shape = 'u8[32768]{0}', space=vmem, size = 0x8000, scoped, tag = 'input window, operand 9, single buffered']
    #allocation14 [shape = 'u8[20480]{0}', space=vmem, size = 0x5000, scoped, tag = 'output window, operand 0, single buffered']
    %16 = vsyncpa [#allocation3], 0
    %17 = vsyncpa [#allocation6], 0
    %18 = vsyncpa [#allocation9], 0
    %19 = vsyncpa [#allocation12], 0
    %20 = vsyncpa [#allocation4], 0
    // Predicated region
    $region2: #{tpu_custom_call.1} parent=1 // pred_check
      _
    $region3: #{tpu_custom_call.1} parent=1 // pred_check_branch
      %22 = sbr.rel (0) target = $region5
    $region4: #{tpu_custom_call.1} parent=1 // pred_region
      %s24 = ssub.s32 64, 64
      %25 = vsyncadd [#allocation3], %s24
      %s27 = sshll.u32 [#allocation2], 4
      %s28 = int_to_ptr.vmem [resolvable:$true] %s27
      %30 = dma.hbm_to_vmem [thread:$0]  %s0, 64, %s28, [#allocation3]
    $region5: #{tpu_custom_call.1} parent=1 // pred_fallthru
      _
    // Predicated region
    $region6: #{tpu_custom_call.1} parent=1 // pred_check
      _
    $region7: #{tpu_custom_call.1} parent=1 // pred_check_branch
      %32 = sbr.rel (0) target = $region9
    $region8: #{tpu_custom_call.1} parent=1 // pred_region
      %s34 = ssub.s32 320, 320
      %35 = vsyncadd [#allocation6], %s34
      %s36 = sshll.u32 [#allocation5], 4
      %s37 = int_to_ptr.vmem [resolvable:$true] %s36
      %42 = dma.hbm_to_vmem [thread:$0]  %s1, 320, %s37, [#allocation6], 64, 64, 4
    $region9: #{tpu_custom_call.1} parent=1 // pred_fallthru
      _
    // Predicated region
    $region10: #{tpu_custom_call.1} parent=1 // pred_check
      _
    $region11: #{tpu_custom_call.1} parent=1 // pred_check_branch
      %44 = sbr.rel (0) target = $region13
    $region12: #{tpu_custom_call.1} parent=1 // pred_region
      %s46 = ssub.s32 1024, 1024
      %47 = vsyncadd [#allocation6], %s46
      %s48 = sshll.u32 [#allocation7], 4
      %s49 = int_to_ptr.vmem [resolvable:$true] %s48
      %54 = dma.hbm_to_vmem [thread:$0]  %s2, 1024, %s49, [#allocation6], 64, 64, 4
    $region13: #{tpu_custom_call.1} parent=1 // pred_fallthru
      _
    // Predicated region
    $region14: #{tpu_custom_call.1} parent=1 // pred_check
      _
    $region15: #{tpu_custom_call.1} parent=1 // pred_check_branch
      %56 = sbr.rel (0) target = $region17
    $region16: #{tpu_custom_call.1} parent=1 // pred_region
      %s58 = ssub.s32 1024, 1024
      %59 = vsyncadd [#allocation9], %s58
      %s60 = sshll.u32 [#allocation8], 4
      %s61 = int_to_ptr.vmem [resolvable:$true] %s60
      %66 = dma.hbm_to_vmem [thread:$0]  %s3, 1024, %s61, [#allocation9], 64, 64, 4
    $region17: #{tpu_custom_call.1} parent=1 // pred_fallthru
      _
    // Predicated region
    $region18: #{tpu_custom_call.1} parent=1 // pred_check
      _
    $region19: #{tpu_custom_call.1} parent=1 // pred_check_branch
      %68 = sbr.rel (0) target = $region21
    $region20: #{tpu_custom_call.1} parent=1 // pred_region
      _
    $region21: #{tpu_custom_call.1} parent=1 // pred_fallthru
      _
    // Predicated region
    $region22: #{tpu_custom_call.1} parent=1 // pred_check
      _
    $region23: #{tpu_custom_call.1} parent=1 // pred_check_branch
      %70 = sbr.rel (0) target = $region25
    $region24: #{tpu_custom_call.1} parent=1 // pred_region
      %s72 = ssub.s32 1024, 1024
      %73 = vsyncadd [#allocation9], %s72
      %s74 = sshll.u32 [#allocation10], 4
      %s75 = int_to_ptr.vmem [resolvable:$true] %s74
      %80 = dma.hbm_to_vmem [thread:$0]  %s5, 1024, %s75, [#allocation9], 64, 64, 4
    $region25: #{tpu_custom_call.1} parent=1 // pred_fallthru
      _
    // Predicated region
    $region26: #{tpu_custom_call.1} parent=1 // pred_check
      _
    $region27: #{tpu_custom_call.1} parent=1 // pred_check_branch
      %82 = sbr.rel (0) target = $region29
    $region28: #{tpu_custom_call.1} parent=1 // pred_region
      _
    $region29: #{tpu_custom_call.1} parent=1 // pred_fallthru
      _
    // Predicated region
    $region30: #{tpu_custom_call.1} parent=1 // pred_check
      _
    $region31: #{tpu_custom_call.1} parent=1 // pred_check_branch
      %84 = sbr.rel (0) target = $region33
    $region32: #{tpu_custom_call.1} parent=1 // pred_region
      %s86 = ssub.s32 1024, 1024
      %87 = vsyncadd [#allocation12], %s86
      %s88 = sshll.u32 [#allocation11], 4
      %s89 = int_to_ptr.vmem [resolvable:$true] %s88
      %94 = dma.hbm_to_vmem [thread:$0]  %s7, 1024, %s89, [#allocation12], 64, 64, 4
    $region33: #{tpu_custom_call.1} parent=1 // pred_fallthru
      _
    // Predicated region
    $region34: #{tpu_custom_call.1} parent=1 // pred_check
      _
    $region35: #{tpu_custom_call.1} parent=1 // pred_check_branch
      %96 = sbr.rel (0) target = $region37
    $region36: #{tpu_custom_call.1} parent=1 // pred_region
      _
    $region37: #{tpu_custom_call.1} parent=1 // pred_fallthru
      _
    // Predicated region
    $region38: #{tpu_custom_call.1} parent=1 // pred_check
      _
    $region39: #{tpu_custom_call.1} parent=1 // pred_check_branch
      %98 = sbr.rel (0) target = $region41
    $region40: #{tpu_custom_call.1} parent=1 // pred_region
      %s100 = ssub.s32 1024, 1024
      %101 = vsyncadd [#allocation12], %s100
      %s102 = sshll.u32 [#allocation13], 4
      %s103 = int_to_ptr.vmem [resolvable:$true] %s102
      %108 = dma.hbm_to_vmem [thread:$0]  %s9, 1024, %s103, [#allocation12], 64, 64, 4
    $region41: #{tpu_custom_call.1} parent=1 // pred_fallthru
      _
    // Predicated region
    $region42: #{tpu_custom_call.1} parent=1 // pred_check
      _
    $region43: #{tpu_custom_call.1} parent=1 // pred_check_branch
      %110 = sbr.rel (0) target = $region45
    $region44: #{tpu_custom_call.1} parent=1 // pred_region
      _
    $region45: #{tpu_custom_call.1} parent=1 // pred_fallthru
      _
    // Predicated region
    $region46: #{tpu_custom_call.1} parent=1 // pred_check
      _
    $region47: #{tpu_custom_call.1} parent=1 // pred_check_branch
      %112 = sbr.rel (0) target = $region49
    $region48: #{tpu_custom_call.1} parent=1 // pred_region
      %113 = dma.done [#allocation3], 64
    $region49: #{tpu_custom_call.1} parent=1 // pred_fallthru
      _
    // Predicated region
    $region50: #{tpu_custom_call.1} parent=1 // pred_check
      _
    $region51: #{tpu_custom_call.1} parent=1 // pred_check_branch
      %115 = sbr.rel (0) target = $region53
    $region52: #{tpu_custom_call.1} parent=1 // pred_region
      %116 = dma.done [#allocation6], 320
    $region53: #{tpu_custom_call.1} parent=1 // pred_fallthru
      _
    // Predicated region
    $region54: #{tpu_custom_call.1} parent=1 // pred_check
      _
    $region55: #{tpu_custom_call.1} parent=1 // pred_check_branch
      %118 = sbr.rel (0) target = $region57
    $region56: #{tpu_custom_call.1} parent=1 // pred_region
      %119 = dma.done [#allocation6], 1024
    $region57: #{tpu_custom_call.1} parent=1 // pred_fallthru
      _
    // Predicated region
    $region58: #{tpu_custom_call.1} parent=1 // pred_check
      _
    $region59: #{tpu_custom_call.1} parent=1 // pred_check_branch
      %121 = sbr.rel (0) target = $region61
    $region60: #{tpu_custom_call.1} parent=1 // pred_region
      %122 = dma.done [#allocation9], 1024
    $region61: #{tpu_custom_call.1} parent=1 // pred_fallthru
      _
    // Predicated region
    $region62: #{tpu_custom_call.1} parent=1 // pred_check
      _
    $region63: #{tpu_custom_call.1} parent=1 // pred_check_branch
      %124 = sbr.rel (0) target = $region65
    $region64: #{tpu_custom_call.1} parent=1 // pred_region
      %125 = dma.done [#allocation9], 1024
    $region65: #{tpu_custom_call.1} parent=1 // pred_fallthru
      _
    // Predicated region
    $region66: #{tpu_custom_call.1} parent=1 // pred_check
      _
    $region67: #{tpu_custom_call.1} parent=1 // pred_check_branch
      %127 = sbr.rel (0) target = $region69
    $region68: #{tpu_custom_call.1} parent=1 // pred_region
      %128 = dma.done [#allocation12], 1024
    $region69: #{tpu_custom_call.1} parent=1 // pred_fallthru
      _
    // Predicated region
    $region70: #{tpu_custom_call.1} parent=1 // pred_check
      _
    $region71: #{tpu_custom_call.1} parent=1 // pred_check_branch
      %130 = sbr.rel (0) target = $region73
    $region72: #{tpu_custom_call.1} parent=1 // pred_region
      %131 = dma.done [#allocation12], 1024
    $region73: #{tpu_custom_call.1} parent=1 // pred_fallthru
      _
    %v133 = vld [vmem:[#allocation2] sm:$0xf]
    %v134 = vld [vmem:[#allocation7] sm:$0xf]
    %v135 = vld [vmem:[#allocation7 + $0x4] sm:$0xf]
    %v136 = vld [vmem:[#allocation7 + $0x8] sm:$0xf]
    %v137 = vld [vmem:[#allocation7 + $0xc] sm:$0xf]
    %v138 = vld [vmem:[#allocation7 + $0x10] sm:$0xf]
    %v139 = vld [vmem:[#allocation7 + $0x14] sm:$0xf]
    %v140 = vld [vmem:[#allocation7 + $0x18] sm:$0xf]
    %v141 = vld [vmem:[#allocation7 + $0x1c] sm:$0xf]
    %v142 = vld [vmem:[#allocation7 + $0x20] sm:$0xf]
    %v143 = vld [vmem:[#allocation7 + $0x24] sm:$0xf]
    %v144 = vld [vmem:[#allocation7 + $0x28] sm:$0xf]
    %v145 = vld [vmem:[#allocation7 + $0x2c] sm:$0xf]
    %v146 = vld [vmem:[#allocation7 + $0x30] sm:$0xf]
    %v147 = vld [vmem:[#allocation7 + $0x34] sm:$0xf]
    %v148 = vld [vmem:[#allocation7 + $0x38] sm:$0xf]
    %v149 = vld [vmem:[#allocation7 + $0x3c] sm:$0xf]
    %v150 = vld [vmem:[%s4] sm:$0x1]
    %v152 = vlaneseq
    %v153 = vshrl.u32 %v152, 7
    %v154 = vsub.s32 0, %v153
    %v155 = vrot.slane %v150, %v154
    %v173 = vunpack.c.l.b16 %v134
    %v174 = vunpack.c.l.b16 %v135
    %v175 = vunpack.c.l.b16 %v136
    %v176 = vunpack.c.l.b16 %v137
    %v177 = vunpack.c.l.b16 %v138
    %v178 = vunpack.c.l.b16 %v139
    %v179 = vunpack.c.l.b16 %v140
    %v180 = vunpack.c.l.b16 %v141
    %v181 = vunpack.c.l.b16 %v142
    %v182 = vunpack.c.l.b16 %v143
    %v183 = vunpack.c.l.b16 %v144
    %v184 = vunpack.c.l.b16 %v145
    %v185 = vunpack.c.l.b16 %v146
    %v186 = vunpack.c.l.b16 %v147
    %v187 = vunpack.c.l.b16 %v148
    %v188 = vunpack.c.l.b16 %v149
    %v189 = vpack.c.b16 %v174, %v173
    %v190 = vpack.c.b16 %v176, %v175
    %v191 = vpack.c.b16 %v178, %v177
    %v192 = vpack.c.b16 %v180, %v179
    %v193 = vpack.c.b16 %v182, %v181
    %v194 = vpack.c.b16 %v184, %v183
    %v195 = vpack.c.b16 %v186, %v185
    %v196 = vpack.c.b16 %v188, %v187
    %205 = vmatprep.subr.bf16.mxu0 0
    %206 = vmatpush1.bf16.msra.mxu0 %v189
    %207 = vmatprep.subr.bf16.mxu0 0
    %208 = vmatpush1.bf16.msra.mxu0 %v190
    %209 = vmatprep.subr.bf16.mxu0 0
    %210 = vmatpush1.bf16.msra.mxu0 %v191
    %211 = vmatprep.subr.bf16.mxu0 0
    %212 = vmatpush1.bf16.msra.mxu0 %v192
    %213 = vmatprep.subr.bf16.mxu0 0
    %214 = vmatpush1.bf16.msra.mxu0 %v193
    %215 = vmatprep.subr.bf16.mxu0 0
    %216 = vmatpush1.bf16.msra.mxu0 %v194
    %217 = vmatprep.subr.bf16.mxu0 0
    %218 = vmatpush1.bf16.msra.mxu0 %v195
    %219 = vmatprep.subr.bf16.mxu0 0
    %220 = vmatpush1.bf16.msra.mxu0 %v196
    %221 = vmatprep.subr.bf16.mxu0 0
    %222 = vmatpush1.bf16.msra.mxu0 0
    %223 = vmatprep.subr.bf16.mxu0 0
    %224 = vmatpush1.bf16.msra.mxu0 0
    %225 = vmatprep.subr.bf16.mxu0 0
    %226 = vmatpush1.bf16.msra.mxu0 0
    %227 = vmatprep.subr.bf16.mxu0 0
    %228 = vmatpush1.bf16.msra.mxu0 0
    %229 = vmatprep.subr.bf16.mxu0 0
    %230 = vmatpush1.bf16.msra.mxu0 0
    %231 = vmatprep.subr.bf16.mxu0 0
    %232 = vmatpush1.bf16.msra.mxu0 0
    %233 = vmatprep.subr.bf16.mxu0 0
    %234 = vmatpush1.bf16.msra.mxu0 0
    %235 = vmatprep.subr.bf16.mxu0 0
    %236 = vmatpush1.bf16.msra.mxu0 0
    %237 = vmatprep.mubr.bf16.mxu0 0
    %238 = vmatmul.mubr.bf16.gmra.mrb[0].mxu0 %v133
    %v239 = vpop.f32.mrb[0].mxu0
    %v240 = vadd.f32 %v155, %v239
    %v241 = vpop.f32.mrb[0].mxu0
    %v242 = vpop.f32.mrb[0].mxu0
    %v243 = vpop.f32.mrb[0].mxu0
    %244 = vdwg.mxu0
    %v245 = vld [vmem:[#allocation5] sm:$0xf]
    %v246 = vld [vmem:[#allocation5 + $0x4] sm:$0xf]
    %v247 = vld [vmem:[#allocation5 + $0x8] sm:$0xf]
    %v248 = vld [vmem:[#allocation5 + $0xc] sm:$0xf]
    %v249 = vld [vmem:[#allocation5 + $0x10] sm:$0xf]
    %v250 = vld [vmem:[#allocation8] sm:$0xf]
    %v251 = vld [vmem:[#allocation8 + $0x4] sm:$0xf]
    %v252 = vld [vmem:[#allocation8 + $0x8] sm:$0xf]
    %v253 = vld [vmem:[#allocation8 + $0xc] sm:$0xf]
    %v254 = vld [vmem:[#allocation8 + $0x10] sm:$0xf]
    %v255 = vld [vmem:[#allocation8 + $0x14] sm:$0xf]
    %v256 = vld [vmem:[#allocation8 + $0x18] sm:$0xf]
    %v257 = vld [vmem:[#allocation8 + $0x1c] sm:$0xf]
    %v258 = vld [vmem:[#allocation8 + $0x20] sm:$0xf]
    %v259 = vld [vmem:[#allocation8 + $0x24] sm:$0xf]
    %v260 = vld [vmem:[#allocation8 + $0x28] sm:$0xf]
    %v261 = vld [vmem:[#allocation8 + $0x2c] sm:$0xf]
    %v262 = vld [vmem:[#allocation8 + $0x30] sm:$0xf]
    %v263 = vld [vmem:[#allocation8 + $0x34] sm:$0xf]
    %v264 = vld [vmem:[#allocation8 + $0x38] sm:$0xf]
    %v265 = vld [vmem:[#allocation8 + $0x3c] sm:$0xf]
    %v271 = vunpack.c.l.b16 %v245
    %v272 = vunpack.c.l.b16 %v246
    %v273 = vunpack.c.l.b16 %v247
    %v274 = vunpack.c.l.b16 %v248
    %v275 = vunpack.c.l.b16 %v249
    %v276 = vpack.c.b16 %v272, %v271
    %v277 = vpack.c.b16 %v274, %v273
    %v278 = vpack.c.b16 %v275, %v275
    %v298 = vunpack.c.l.b16 %v250
    %v299 = vunpack.c.l.b16 %v251
    %v300 = vunpack.c.l.b16 %v252
    %v301 = vunpack.c.l.b16 %v253
    %v302 = vunpack.c.l.b16 %v254
    %v303 = vunpack.c.l.b16 %v255
    %v304 = vunpack.c.l.b16 %v256
    %v305 = vunpack.c.l.b16 %v257
    %v306 = vunpack.c.l.b16 %v258
    %v307 = vunpack.c.l.b16 %v259
    %v308 = vunpack.c.l.b16 %v260
    %v309 = vunpack.c.l.b16 %v261
    %v310 = vunpack.c.l.b16 %v262
    %v311 = vunpack.c.l.b16 %v263
    %v312 = vunpack.c.l.b16 %v264
    %v313 = vunpack.c.l.b16 %v265
    %v314 = vpack.c.b16 %v299, %v298
    %v315 = vpack.c.b16 %v301, %v300
    %v316 = vpack.c.b16 %v303, %v302
    %v317 = vpack.c.b16 %v305, %v304
    %v318 = vpack.c.b16 %v307, %v306
    %v319 = vpack.c.b16 %v309, %v308
    %v320 = vpack.c.b16 %v311, %v310
    %v321 = vpack.c.b16 %v313, %v312
    %330 = vmatprep.subr.bf16.mxu0 0
    %331 = vmatpush1.bf16.msra.mxu0 %v314
    %332 = vmatprep.subr.bf16.mxu0 0
    %333 = vmatpush1.bf16.msra.mxu0 %v315
    %334 = vmatprep.subr.bf16.mxu0 0
    %335 = vmatpush1.bf16.msra.mxu0 %v316
    %336 = vmatprep.subr.bf16.mxu0 0
    %337 = vmatpush1.bf16.msra.mxu0 %v317
    %338 = vmatprep.subr.bf16.mxu0 0
    %339 = vmatpush1.bf16.msra.mxu0 %v318
    %340 = vmatprep.subr.bf16.mxu0 0
    %341 = vmatpush1.bf16.msra.mxu0 %v319
    %342 = vmatprep.subr.bf16.mxu0 0
    %343 = vmatpush1.bf16.msra.mxu0 %v320
    %344 = vmatprep.subr.bf16.mxu0 0
    %345 = vmatpush1.bf16.msra.mxu0 %v321
    %346 = vmatprep.subr.bf16.mxu0 0
    %347 = vmatpush1.bf16.msra.mxu0 0
    %348 = vmatprep.subr.bf16.mxu0 0
    %349 = vmatpush1.bf16.msra.mxu0 0
    %350 = vmatprep.subr.bf16.mxu0 0
    %351 = vmatpush1.bf16.msra.mxu0 0
    %352 = vmatprep.subr.bf16.mxu0 0
    %353 = vmatpush1.bf16.msra.mxu0 0
    %354 = vmatprep.subr.bf16.mxu0 0
    %355 = vmatpush1.bf16.msra.mxu0 0
    %356 = vmatprep.subr.bf16.mxu0 0
    %357 = vmatpush1.bf16.msra.mxu0 0
    %358 = vmatprep.subr.bf16.mxu0 0
    %359 = vmatpush1.bf16.msra.mxu0 0
    %360 = vmatprep.subr.bf16.mxu0 0
    %361 = vmatpush1.bf16.msra.mxu0 0
    %362 = vmatprep.mubr.bf16.mxu0 0
    %363 = vmatmul.mubr.bf16.gmra.mrb[0].mxu0 %v276
    %v364 = vpop.f32.mrb[0].mxu0
    %v365 = vadd.f32 0.0, %v364
    %v366 = vpop.f32.mrb[0].mxu0
    %v367 = vpop.f32.mrb[0].mxu0
    %v368 = vadd.f32 0.0, %v367
    %v369 = vpop.f32.mrb[0].mxu0
    %370 = vmatprep.mubr.bf16.mxu0 0
    %371 = vmatmul.mubr.bf16.gmra.mrb[0].mxu0 %v277
    %v372 = vpop.f32.mrb[0].mxu0
    %v373 = vadd.f32 0.0, %v372
    %v374 = vpop.f32.mrb[0].mxu0
    %v375 = vpop.f32.mrb[0].mxu0
    %v376 = vadd.f32 0.0, %v375
    %v377 = vpop.f32.mrb[0].mxu0
    %378 = vmatprep.mubr.bf16.mxu0 0
    %379 = vmatmul.mubr.bf16.gmra.mrb[0].mxu0 %v278
    %v380 = vpop.f32.mrb[0].mxu0
    %v381 = vadd.f32 0.0, %v380
    %v382 = vpop.f32.mrb[0].mxu0
    %v383 = vpop.f32.mrb[0].mxu0
    %v384 = vpop.f32.mrb[0].mxu0
    %385 = vdwg.mxu0
    %v386 = vadd.f32 %v365, %v240
    %v387 = vadd.f32 %v368, %v240
    %v388 = vadd.f32 %v373, %v240
    %v389 = vadd.f32 %v376, %v240
    %v390 = vadd.f32 %v381, %v240
    %v391 = vmax.f32 %v386, 0.0
    %v392 = vmax.f32 %v387, 0.0
    %v393 = vmax.f32 %v388, 0.0
    %v394 = vmax.f32 %v389, 0.0
    %v395 = vmax.f32 %v390, 0.0
    %v396 = vpack.c.bf16 %v392, %v391
    %v397 = vpack.c.bf16 %v394, %v393
    %v398 = vpack.c.bf16 %v395, %v395
    %v399 = vld [vmem:[#allocation10] sm:$0xf]
    %v400 = vld [vmem:[#allocation10 + $0x4] sm:$0xf]
    %v401 = vld [vmem:[#allocation10 + $0x8] sm:$0xf]
    %v402 = vld [vmem:[#allocation10 + $0xc] sm:$0xf]
    %v403 = vld [vmem:[#allocation10 + $0x10] sm:$0xf]
    %v404 = vld [vmem:[#allocation10 + $0x14] sm:$0xf]
    %v405 = vld [vmem:[#allocation10 + $0x18] sm:$0xf]
    %v406 = vld [vmem:[#allocation10 + $0x1c] sm:$0xf]
    %v407 = vld [vmem:[#allocation10 + $0x20] sm:$0xf]
    %v408 = vld [vmem:[#allocation10 + $0x24] sm:$0xf]
    %v409 = vld [vmem:[#allocation10 + $0x28] sm:$0xf]
    %v410 = vld [vmem:[#allocation10 + $0x2c] sm:$0xf]
    %v411 = vld [vmem:[#allocation10 + $0x30] sm:$0xf]
    %v412 = vld [vmem:[#allocation10 + $0x34] sm:$0xf]
    %v413 = vld [vmem:[#allocation10 + $0x38] sm:$0xf]
    %v414 = vld [vmem:[#allocation10 + $0x3c] sm:$0xf]
    %v415 = vld [vmem:[%s6] sm:$0x1]
    %v417 = vlaneseq
    %v418 = vshrl.u32 %v417, 7
    %v419 = vsub.s32 0, %v418
    %v420 = vrot.slane %v415, %v419
    %v438 = vunpack.c.l.b16 %v399
    %v439 = vunpack.c.l.b16 %v400
    %v440 = vunpack.c.l.b16 %v401
    %v441 = vunpack.c.l.b16 %v402
    %v442 = vunpack.c.l.b16 %v403
    %v443 = vunpack.c.l.b16 %v404
    %v444 = vunpack.c.l.b16 %v405
    %v445 = vunpack.c.l.b16 %v406
    %v446 = vunpack.c.l.b16 %v407
    %v447 = vunpack.c.l.b16 %v408
    %v448 = vunpack.c.l.b16 %v409
    %v449 = vunpack.c.l.b16 %v410
    %v450 = vunpack.c.l.b16 %v411
    %v451 = vunpack.c.l.b16 %v412
    %v452 = vunpack.c.l.b16 %v413
    %v453 = vunpack.c.l.b16 %v414
    %v454 = vpack.c.b16 %v439, %v438
    %v455 = vpack.c.b16 %v441, %v440
    %v456 = vpack.c.b16 %v443, %v442
    %v457 = vpack.c.b16 %v445, %v444
    %v458 = vpack.c.b16 %v447, %v446
    %v459 = vpack.c.b16 %v449, %v448
    %v460 = vpack.c.b16 %v451, %v450
    %v461 = vpack.c.b16 %v453, %v452
    %470 = vmatprep.subr.bf16.mxu0 0
    %471 = vmatpush1.bf16.msra.mxu0 %v454
    %472 = vmatprep.subr.bf16.mxu0 0
    %473 = vmatpush1.bf16.msra.mxu0 %v455
    %474 = vmatprep.subr.bf16.mxu0 0
    %475 = vmatpush1.bf16.msra.mxu0 %v456
    %476 = vmatprep.subr.bf16.mxu0 0
    %477 = vmatpush1.bf16.msra.mxu0 %v457
    %478 = vmatprep.subr.bf16.mxu0 0
    %479 = vmatpush1.bf16.msra.mxu0 %v458
    %480 = vmatprep.subr.bf16.mxu0 0
    %481 = vmatpush1.bf16.msra.mxu0 %v459
    %482 = vmatprep.subr.bf16.mxu0 0
    %483 = vmatpush1.bf16.msra.mxu0 %v460
    %484 = vmatprep.subr.bf16.mxu0 0
    %485 = vmatpush1.bf16.msra.mxu0 %v461
    %486 = vmatprep.subr.bf16.mxu0 0
    %487 = vmatpush1.bf16.msra.mxu0 0
    %488 = vmatprep.subr.bf16.mxu0 0
    %489 = vmatpush1.bf16.msra.mxu0 0
    %490 = vmatprep.subr.bf16.mxu0 0
    %491 = vmatpush1.bf16.msra.mxu0 0
    %492 = vmatprep.subr.bf16.mxu0 0
    %493 = vmatpush1.bf16.msra.mxu0 0
    %494 = vmatprep.subr.bf16.mxu0 0
    %495 = vmatpush1.bf16.msra.mxu0 0
    %496 = vmatprep.subr.bf16.mxu0 0
    %497 = vmatpush1.bf16.msra.mxu0 0
    %498 = vmatprep.subr.bf16.mxu0 0
    %499 = vmatpush1.bf16.msra.mxu0 0
    %500 = vmatprep.subr.bf16.mxu0 0
    %501 = vmatpush1.bf16.msra.mxu0 0
    %502 = vmatprep.mubr.bf16.mxu0 0
    %503 = vmatmul.mubr.bf16.gmra.mrb[0].mxu0 %v396
    %v504 = vpop.f32.mrb[0].mxu0
    %v505 = vadd.f32 %v420, %v504
    %v506 = vpop.f32.mrb[0].mxu0
    %v507 = vpop.f32.mrb[0].mxu0
    %v508 = vadd.f32 %v420, %v507
    %v509 = vpop.f32.mrb[0].mxu0
    %510 = vmatprep.mubr.bf16.mxu0 0
    %511 = vmatmul.mubr.bf16.gmra.mrb[0].mxu0 %v397
    %v512 = vpop.f32.mrb[0].mxu0
    %v513 = vadd.f32 %v420, %v512
    %v514 = vpop.f32.mrb[0].mxu0
    %v515 = vpop.f32.mrb[0].mxu0
    %v516 = vadd.f32 %v420, %v515
    %v517 = vpop.f32.mrb[0].mxu0
    %518 = vmatprep.mubr.bf16.mxu0 0
    %519 = vmatmul.mubr.bf16.gmra.mrb[0].mxu0 %v398
    %v520 = vpop.f32.mrb[0].mxu0
    %v521 = vadd.f32 %v420, %v520
    %v522 = vpop.f32.mrb[0].mxu0
    %v523 = vpop.f32.mrb[0].mxu0
    %v524 = vpop.f32.mrb[0].mxu0
    %525 = vdwg.mxu0
    %v526 = vmax.f32 %v505, 0.0
    %v527 = vmax.f32 %v508, 0.0
    %v528 = vmax.f32 %v513, 0.0
    %v529 = vmax.f32 %v516, 0.0
    %v530 = vmax.f32 %v521, 0.0
    %v531 = vpack.c.bf16 %v527, %v526
    %v532 = vpack.c.bf16 %v529, %v528
    %v533 = vpack.c.bf16 %v530, %v530
    %v534 = vld [vmem:[#allocation11] sm:$0xf]
    %v535 = vld [vmem:[#allocation11 + $0x4] sm:$0xf]
    %v536 = vld [vmem:[#allocation11 + $0x8] sm:$0xf]
    %v537 = vld [vmem:[#allocation11 + $0xc] sm:$0xf]
    %v538 = vld [vmem:[#allocation11 + $0x10] sm:$0xf]
    %v539 = vld [vmem:[#allocation11 + $0x14] sm:$0xf]
    %v540 = vld [vmem:[#allocation11 + $0x18] sm:$0xf]
    %v541 = vld [vmem:[#allocation11 + $0x1c] sm:$0xf]
    %v542 = vld [vmem:[#allocation11 + $0x20] sm:$0xf]
    %v543 = vld [vmem:[#allocation11 + $0x24] sm:$0xf]
    %v544 = vld [vmem:[#allocation11 + $0x28] sm:$0xf]
    %v545 = vld [vmem:[#allocation11 + $0x2c] sm:$0xf]
    %v546 = vld [vmem:[#allocation11 + $0x30] sm:$0xf]
    %v547 = vld [vmem:[#allocation11 + $0x34] sm:$0xf]
    %v548 = vld [vmem:[#allocation11 + $0x38] sm:$0xf]
    %v549 = vld [vmem:[#allocation11 + $0x3c] sm:$0xf]
    %v550 = vld [vmem:[%s8] sm:$0x1]
    %v552 = vlaneseq
    %v553 = vshrl.u32 %v552, 7
    %v554 = vsub.s32 0, %v553
    %v555 = vrot.slane %v550, %v554
    %v573 = vunpack.c.l.b16 %v534
    %v574 = vunpack.c.l.b16 %v535
    %v575 = vunpack.c.l.b16 %v536
    %v576 = vunpack.c.l.b16 %v537
    %v577 = vunpack.c.l.b16 %v538
    %v578 = vunpack.c.l.b16 %v539
    %v579 = vunpack.c.l.b16 %v540
    %v580 = vunpack.c.l.b16 %v541
    %v581 = vunpack.c.l.b16 %v542
    %v582 = vunpack.c.l.b16 %v543
    %v583 = vunpack.c.l.b16 %v544
    %v584 = vunpack.c.l.b16 %v545
    %v585 = vunpack.c.l.b16 %v546
    %v586 = vunpack.c.l.b16 %v547
    %v587 = vunpack.c.l.b16 %v548
    %v588 = vunpack.c.l.b16 %v549
    %v589 = vpack.c.b16 %v574, %v573
    %v590 = vpack.c.b16 %v576, %v575
    %v591 = vpack.c.b16 %v578, %v577
    %v592 = vpack.c.b16 %v580, %v579
    %v593 = vpack.c.b16 %v582, %v581
    %v594 = vpack.c.b16 %v584, %v583
    %v595 = vpack.c.b16 %v586, %v585
    %v596 = vpack.c.b16 %v588, %v587
    %605 = vmatprep.subr.bf16.mxu0 0
    %606 = vmatpush1.bf16.msra.mxu0 %v589
    %607 = vmatprep.subr.bf16.mxu0 0
    %608 = vmatpush1.bf16.msra.mxu0 %v590
    %609 = vmatprep.subr.bf16.mxu0 0
    %610 = vmatpush1.bf16.msra.mxu0 %v591
    %611 = vmatprep.subr.bf16.mxu0 0
    %612 = vmatpush1.bf16.msra.mxu0 %v592
    %613 = vmatprep.subr.bf16.mxu0 0
    %614 = vmatpush1.bf16.msra.mxu0 %v593
    %615 = vmatprep.subr.bf16.mxu0 0
    %616 = vmatpush1.bf16.msra.mxu0 %v594
    %617 = vmatprep.subr.bf16.mxu0 0
    %618 = vmatpush1.bf16.msra.mxu0 %v595
    %619 = vmatprep.subr.bf16.mxu0 0
    %620 = vmatpush1.bf16.msra.mxu0 %v596
    %621 = vmatprep.subr.bf16.mxu0 0
    %622 = vmatpush1.bf16.msra.mxu0 0
    %623 = vmatprep.subr.bf16.mxu0 0
    %624 = vmatpush1.bf16.msra.mxu0 0
    %625 = vmatprep.subr.bf16.mxu0 0
    %626 = vmatpush1.bf16.msra.mxu0 0
    %627 = vmatprep.subr.bf16.mxu0 0
    %628 = vmatpush1.bf16.msra.mxu0 0
    %629 = vmatprep.subr.bf16.mxu0 0
    %630 = vmatpush1.bf16.msra.mxu0 0
    %631 = vmatprep.subr.bf16.mxu0 0
    %632 = vmatpush1.bf16.msra.mxu0 0
    %633 = vmatprep.subr.bf16.mxu0 0
    %634 = vmatpush1.bf16.msra.mxu0 0
    %635 = vmatprep.subr.bf16.mxu0 0
    %636 = vmatpush1.bf16.msra.mxu0 0
    %637 = vmatprep.mubr.bf16.mxu0 0
    %638 = vmatmul.mubr.bf16.gmra.mrb[0].mxu0 %v531
    %v639 = vpop.f32.mrb[0].mxu0
    %v640 = vadd.f32 %v555, %v639
    %v641 = vpop.f32.mrb[0].mxu0
    %v642 = vpop.f32.mrb[0].mxu0
    %v643 = vadd.f32 %v555, %v642
    %v644 = vpop.f32.mrb[0].mxu0
    %645 = vmatprep.mubr.bf16.mxu0 0
    %646 = vmatmul.mubr.bf16.gmra.mrb[0].mxu0 %v532
    %v647 = vpop.f32.mrb[0].mxu0
    %v648 = vadd.f32 %v555, %v647
    %v649 = vpop.f32.mrb[0].mxu0
    %v650 = vpop.f32.mrb[0].mxu0
    %v651 = vadd.f32 %v555, %v650
    %v652 = vpop.f32.mrb[0].mxu0
    %653 = vmatprep.mubr.bf16.mxu0 0
    %654 = vmatmul.mubr.bf16.gmra.mrb[0].mxu0 %v533
    %v655 = vpop.f32.mrb[0].mxu0
    %v656 = vadd.f32 %v555, %v655
    %v657 = vpop.f32.mrb[0].mxu0
    %v658 = vpop.f32.mrb[0].mxu0
    %v659 = vpop.f32.mrb[0].mxu0
    %660 = vdwg.mxu0
    %v661 = vmax.f32 %v640, 0.0
    %v662 = vmax.f32 %v643, 0.0
    %v663 = vmax.f32 %v648, 0.0
    %v664 = vmax.f32 %v651, 0.0
    %v665 = vmax.f32 %v656, 0.0
    %v666 = vpack.c.bf16 %v662, %v661
    %v667 = vpack.c.bf16 %v664, %v663
    %v668 = vpack.c.bf16 %v665, %v665
    %v669 = vld [vmem:[#allocation13] sm:$0xf]
    %v670 = vld [vmem:[#allocation13 + $0x4] sm:$0xf]
    %v671 = vld [vmem:[#allocation13 + $0x8] sm:$0xf]
    %v672 = vld [vmem:[#allocation13 + $0xc] sm:$0xf]
    %v673 = vld [vmem:[#allocation13 + $0x10] sm:$0xf]
    %v674 = vld [vmem:[#allocation13 + $0x14] sm:$0xf]
    %v675 = vld [vmem:[#allocation13 + $0x18] sm:$0xf]
    %v676 = vld [vmem:[#allocation13 + $0x1c] sm:$0xf]
    %v677 = vld [vmem:[#allocation13 + $0x20] sm:$0xf]
    %v678 = vld [vmem:[#allocation13 + $0x24] sm:$0xf]
    %v679 = vld [vmem:[#allocation13 + $0x28] sm:$0xf]
    %v680 = vld [vmem:[#allocation13 + $0x2c] sm:$0xf]
    %v681 = vld [vmem:[#allocation13 + $0x30] sm:$0xf]
    %v682 = vld [vmem:[#allocation13 + $0x34] sm:$0xf]
    %v683 = vld [vmem:[#allocation13 + $0x38] sm:$0xf]
    %v684 = vld [vmem:[#allocation13 + $0x3c] sm:$0xf]
    %v685 = vld [vmem:[%s10] sm:$0x1]
    %v687 = vlaneseq
    %v688 = vshrl.u32 %v687, 7
    %v689 = vsub.s32 0, %v688
    %v690 = vrot.slane %v685, %v689
    %v708 = vunpack.c.l.b16 %v669
    %v709 = vunpack.c.l.b16 %v670
    %v710 = vunpack.c.l.b16 %v671
    %v711 = vunpack.c.l.b16 %v672
    %v712 = vunpack.c.l.b16 %v673
    %v713 = vunpack.c.l.b16 %v674
    %v714 = vunpack.c.l.b16 %v675
    %v715 = vunpack.c.l.b16 %v676
    %v716 = vunpack.c.l.b16 %v677
    %v717 = vunpack.c.l.b16 %v678
    %v718 = vunpack.c.l.b16 %v679
    %v719 = vunpack.c.l.b16 %v680
    %v720 = vunpack.c.l.b16 %v681
    %v721 = vunpack.c.l.b16 %v682
    %v722 = vunpack.c.l.b16 %v683
    %v723 = vunpack.c.l.b16 %v684
    %v724 = vpack.c.b16 %v709, %v708
    %v725 = vpack.c.b16 %v711, %v710
    %v726 = vpack.c.b16 %v713, %v712
    %v727 = vpack.c.b16 %v715, %v714
    %v728 = vpack.c.b16 %v717, %v716
    %v729 = vpack.c.b16 %v719, %v718
    %v730 = vpack.c.b16 %v721, %v720
    %v731 = vpack.c.b16 %v723, %v722
    %740 = vmatprep.subr.bf16.mxu0 0
    %741 = vmatpush1.bf16.msra.mxu0 %v724
    %742 = vmatprep.subr.bf16.mxu0 0
    %743 = vmatpush1.bf16.msra.mxu0 %v725
    %744 = vmatprep.subr.bf16.mxu0 0
    %745 = vmatpush1.bf16.msra.mxu0 %v726
    %746 = vmatprep.subr.bf16.mxu0 0
    %747 = vmatpush1.bf16.msra.mxu0 %v727
    %748 = vmatprep.subr.bf16.mxu0 0
    %749 = vmatpush1.bf16.msra.mxu0 %v728
    %750 = vmatprep.subr.bf16.mxu0 0
    %751 = vmatpush1.bf16.msra.mxu0 %v729
    %752 = vmatprep.subr.bf16.mxu0 0
    %753 = vmatpush1.bf16.msra.mxu0 %v730
    %754 = vmatprep.subr.bf16.mxu0 0
    %755 = vmatpush1.bf16.msra.mxu0 %v731
    %756 = vmatprep.subr.bf16.mxu0 0
    %757 = vmatpush1.bf16.msra.mxu0 0
    %758 = vmatprep.subr.bf16.mxu0 0
    %759 = vmatpush1.bf16.msra.mxu0 0
    %760 = vmatprep.subr.bf16.mxu0 0
    %761 = vmatpush1.bf16.msra.mxu0 0
    %762 = vmatprep.subr.bf16.mxu0 0
    %763 = vmatpush1.bf16.msra.mxu0 0
    %764 = vmatprep.subr.bf16.mxu0 0
    %765 = vmatpush1.bf16.msra.mxu0 0
    %766 = vmatprep.subr.bf16.mxu0 0
    %767 = vmatpush1.bf16.msra.mxu0 0
    %768 = vmatprep.subr.bf16.mxu0 0
    %769 = vmatpush1.bf16.msra.mxu0 0
    %770 = vmatprep.subr.bf16.mxu0 0
    %771 = vmatpush1.bf16.msra.mxu0 0
    %772 = vmatprep.mubr.bf16.mxu0 0
    %773 = vmatmul.mubr.bf16.gmra.mrb[0].mxu0 %v666
    %v774 = vpop.f32.mrb[0].mxu0
    %v775 = vadd.f32 %v690, %v774
    %v776 = vpop.f32.mrb[0].mxu0
    %v777 = vpop.f32.mrb[0].mxu0
    %v778 = vadd.f32 %v690, %v777
    %v779 = vpop.f32.mrb[0].mxu0
    %780 = vmatprep.mubr.bf16.mxu0 0
    %781 = vmatmul.mubr.bf16.gmra.mrb[0].mxu0 %v667
    %v782 = vpop.f32.mrb[0].mxu0
    %v783 = vadd.f32 %v690, %v782
    %v784 = vpop.f32.mrb[0].mxu0
    %v785 = vpop.f32.mrb[0].mxu0
    %v786 = vadd.f32 %v690, %v785
    %v787 = vpop.f32.mrb[0].mxu0
    %788 = vmatprep.mubr.bf16.mxu0 0
    %789 = vmatmul.mubr.bf16.gmra.mrb[0].mxu0 %v668
    %v790 = vpop.f32.mrb[0].mxu0
    %v791 = vadd.f32 %v690, %v790
    %v792 = vpop.f32.mrb[0].mxu0
    %v793 = vpop.f32.mrb[0].mxu0
    %v794 = vpop.f32.mrb[0].mxu0
    %795 = vdwg.mxu0
    %796 = vst [vmem:[#allocation14] sm:$0xff] %v775
    %797 = vst [vmem:[#allocation14 + $0x8] sm:$0xff] %v778
    %798 = vst [vmem:[#allocation14 + $0x10] sm:$0xff] %v783
    %799 = vst [vmem:[#allocation14 + $0x18] sm:$0xff] %v786
    %800 = vst [vmem:[#allocation14 + $0x20] sm:$0xff] %v791
    // Predicated region
    $region74: #{tpu_custom_call.1} parent=1 // pred_check
      _
    $region75: #{tpu_custom_call.1} parent=1 // pred_check_branch
      %802 = sbr.rel (0) target = $region77
    $region76: #{tpu_custom_call.1} parent=1 // pred_region
      %s804 = ssub.s32 640, 640
      %805 = vsyncadd [#allocation4], %s804
      %s807 = sshll.u32 [#allocation14], 4
      %s808 = int_to_ptr.vmem [resolvable:$true] %s807
      %810 = dma.vmem_to_hbm [thread:$0]  %s808, 640, %s11, [#allocation4]
    $region77: #{tpu_custom_call.1} parent=1 // pred_fallthru
      _
    // Predicated region
    $region78: #{tpu_custom_call.1} parent=1 // pred_check
      _
    $region79: #{tpu_custom_call.1} parent=1 // pred_check_branch
      %812 = sbr.rel (0) target = $region81
    $region80: #{tpu_custom_call.1} parent=1 // pred_region
      %813 = dma.done [#allocation4], 640
    $region81: #{tpu_custom_call.1} parent=1 // pred_fallthru
      _
    %814 = vsyncpa [#allocation3], 1
    %815 = vsyncpa [#allocation6], 1
    %816 = vsyncpa [#allocation9], 1
    %817 = vsyncpa [#allocation12], 1
    %818 = vsyncpa [#allocation4], 1

// kernel: tpu_custom_call.1
$region0: #{tpu_custom_call.1}
  #allocation0 [shape = 'u32[]', space=smem, size = 0x4, offset = 0x4, fixed_abs, tag = 'smem constant byte address 0x4 - core index']
  #allocation1 [shape = 'u32[144,128]{1,0:T(1,128)}', space=vmem, size = 0x12000, scoped, tag = 'internal scratch']
  %s0 = inlined_call_operand.hbm [shape: bf16[8,128], index: 0, kind: input, shape index: {}]
  %s1 = inlined_call_operand.hbm [shape: bf16[5,8,128], index: 1, kind: input, shape index: {}]
  %s2 = inlined_call_operand.hbm [shape: bf16[128,128], index: 2, kind: input, shape index: {}]
  %s3 = inlined_call_operand.hbm [shape: bf16[128,128], index: 3, kind: input, shape index: {}]
  %s4 = inlined_call_operand.vmem [shape: f32[1,128], index: 4, kind: input, shape index: {}]
  %s5 = inlined_call_operand.hbm [shape: bf16[128,128], index: 5, kind: input, shape index: {}]
  %s6 = inlined_call_operand.vmem [shape: f32[1,128], index: 6, kind: input, shape index: {}]
  %s7 = inlined_call_operand.hbm [shape: bf16[128,128], index: 7, kind: input, shape index: {}]
  %s8 = inlined_call_operand.vmem [shape: f32[1,128], index: 8, kind: input, shape index: {}]
  %s9 = inlined_call_operand.hbm [shape: bf16[128,128], index: 9, kind: input, shape index: {}]
  %s10 = inlined_call_operand.vmem [shape: f32[1,128], index: 10, kind: input, shape index: {}]
  %s11 = inlined_call_operand.hbm [shape: f32[8,640], index: 11, kind: output, shape index: {}]
  %s12 = sld [smem:[#allocation0]]
  $region82: #{tpu_custom_call.1} parent=0
    _
  %s14 = ssub.s32 1, %s12
  %s15 = scalar_select 0, %s14, %s12
  $region1: #{tpu_custom_call.1} parent=0
    #allocation2 [shape = 'u8[2048]{0}', space=vmem, size = 0x800, scoped, tag = 'input window, operand 0, single buffered']
    #allocation3 [shape = 's32[1]{0}', space=sflag, size = 0x4, scoped, tag = 'scoped memory for tpu_custom_call.1']
    #allocation4 [shape = 's32[1]{0}', space=sflag, size = 0x4, scoped, tag = 'scoped memory for tpu_custom_call.1']
    #allocation5 [shape = 'u8[10240]{0}', space=vmem, size = 0x2800, scoped, tag = 'input window, operand 1, single buffered']
    #allocation6 [shape = 's32[1]{0}', space=sflag, size = 0x4, scoped, tag = 'scoped memory for tpu_custom_call.1']
    #allocation7 [shape = 'u8[32768]{0}', space=vmem, size = 0x8000, scoped, tag = 'input window, operand 2, single buffered']
    #allocation8 [shape = 'u8[32768]{0}', space=vmem, size = 0x8000, scoped, tag = 'input window, operand 3, single buffered']
    #allocation9 [shape = 's32[1]{0}', space=sflag, size = 0x4, scoped, tag = 'scoped memory for tpu_custom_call.1']
    #allocation10 [shape = 'u8[32768]{0}', space=vmem, size = 0x8000, scoped, tag = 'input window, operand 5, single buffered']
    #allocation11 [shape = 'u8[32768]{0}', space=vmem, size = 0x8000, scoped, tag = 'input window, operand 7, single buffered']
    #allocation12 [shape = 's32[1]{0}', space=sflag, size = 0x4, scoped, tag = 'scoped memory for tpu_custom_call.1']
    #allocation13 [shape = 'u8[32768]{0}', space=vmem, size = 0x8000, scoped, tag = 'input window, operand 9, single buffered']
    #allocation14 [shape = 'u8[20480]{0}', space=vmem, size = 0x5000, scoped, tag = 'output window, operand 0, single buffered']
    %16 = vsyncpa [#allocation3], 0
    %17 = vsyncpa [#allocation6], 0
    %18 = vsyncpa [#allocation9], 0
    %19 = vsyncpa [#allocation12], 0
    %20 = vsyncpa [#allocation4], 0
    // Predicated region
    $region2: #{tpu_custom_call.1} parent=1 // pred_check
      _
    $region3: #{tpu_custom_call.1} parent=1 // pred_check_branch
      %22 = sbr.rel (0) target = $region5
    $region4: #{tpu_custom_call.1} parent=1 // pred_region
      %s24 = ssub.s32 64, 64
      %25 = vsyncadd [#allocation3], %s24
      %s27 = sshll.u32 [#allocation2], 4
      %s28 = int_to_ptr.vmem [resolvable:$true] %s27
      %30 = dma.hbm_to_vmem [thread:$0]  %s0, 64, %s28, [#allocation3]
    $region5: #{tpu_custom_call.1} parent=1 // pred_fallthru
      _
    // Predicated region
    $region6: #{tpu_custom_call.1} parent=1 // pred_check
      _
    $region7: #{tpu_custom_call.1} parent=1 // pred_check_branch
      %32 = sbr.rel (0) target = $region9
    $region8: #{tpu_custom_call.1} parent=1 // pred_region
      %s34 = ssub.s32 320, 320
      %35 = vsyncadd [#allocation6], %s34
      %s36 = sshll.u32 [#allocation5], 4
      %s37 = int_to_ptr.vmem [resolvable:$true] %s36
      %42 = dma.hbm_to_vmem [thread:$0]  %s1, 320, %s37, [#allocation6], 64, 64, 4
    $region9: #{tpu_custom_call.1} parent=1 // pred_fallthru
      _
    // Predicated region
    $region10: #{tpu_custom_call.1} parent=1 // pred_check
      _
    $region11: #{tpu_custom_call.1} parent=1 // pred_check_branch
      %44 = sbr.rel (0) target = $region13
    $region12: #{tpu_custom_call.1} parent=1 // pred_region
      %s46 = ssub.s32 1024, 1024
      %47 = vsyncadd [#allocation6], %s46
      %s48 = sshll.u32 [#allocation7], 4
      %s49 = int_to_ptr.vmem [resolvable:$true] %s48
      %54 = dma.hbm_to_vmem [thread:$0]  %s2, 1024, %s49, [#allocation6], 64, 64, 4
    $region13: #{tpu_custom_call.1} parent=1 // pred_fallthru
      _
    // Predicated region
    $region14: #{tpu_custom_call.1} parent=1 // pred_check
      _
    $region15: #{tpu_custom_call.1} parent=1 // pred_check_branch
      %56 = sbr.rel (0) target = $region17
    $region16: #{tpu_custom_call.1} parent=1 // pred_region
      %s58 = ssub.s32 1024, 1024
      %59 = vsyncadd [#allocation9], %s58
      %s60 = sshll.u32 [#allocation8], 4
      %s61 = int_to_ptr.vmem [resolvable:$true] %s60
      %66 = dma.hbm_to_vmem [thread:$0]  %s3, 1024, %s61, [#allocation9], 64, 64, 4
    $region17: #{tpu_custom_call.1} parent=1 // pred_fallthru
      _
    // Predicated region
    $region18: #{tpu_custom_call.1} parent=1 // pred_check
      _
    $region19: #{tpu_custom_call.1} parent=1 // pred_check_branch
      %68 = sbr.rel (0) target = $region21
    $region20: #{tpu_custom_call.1} parent=1 // pred_region
      _
    $region21: #{tpu_custom_call.1} parent=1 // pred_fallthru
      _
    // Predicated region
    $region22: #{tpu_custom_call.1} parent=1 // pred_check
      _
    $region23: #{tpu_custom_call.1} parent=1 // pred_check_branch
      %70 = sbr.rel (0) target = $region25
    $region24: #{tpu_custom_call.1} parent=1 // pred_region
      %s72 = ssub.s32 1024, 1024
      %73 = vsyncadd [#allocation9], %s72
      %s74 = sshll.u32 [#allocation10], 4
      %s75 = int_to_ptr.vmem [resolvable:$true] %s74
      %80 = dma.hbm_to_vmem [thread:$0]  %s5, 1024, %s75, [#allocation9], 64, 64, 4
    $region25: #{tpu_custom_call.1} parent=1 // pred_fallthru
      _
    // Predicated region
    $region26: #{tpu_custom_call.1} parent=1 // pred_check
      _
    $region27: #{tpu_custom_call.1} parent=1 // pred_check_branch
      %82 = sbr.rel (0) target = $region29
    $region28: #{tpu_custom_call.1} parent=1 // pred_region
      _
    $region29: #{tpu_custom_call.1} parent=1 // pred_fallthru
      _
    // Predicated region
    $region30: #{tpu_custom_call.1} parent=1 // pred_check
      _
    $region31: #{tpu_custom_call.1} parent=1 // pred_check_branch
      %84 = sbr.rel (0) target = $region33
    $region32: #{tpu_custom_call.1} parent=1 // pred_region
      %s86 = ssub.s32 1024, 1024
      %87 = vsyncadd [#allocation12], %s86
      %s88 = sshll.u32 [#allocation11], 4
      %s89 = int_to_ptr.vmem [resolvable:$true] %s88
      %94 = dma.hbm_to_vmem [thread:$0]  %s7, 1024, %s89, [#allocation12], 64, 64, 4
    $region33: #{tpu_custom_call.1} parent=1 // pred_fallthru
      _
    // Predicated region
    $region34: #{tpu_custom_call.1} parent=1 // pred_check
      _
    $region35: #{tpu_custom_call.1} parent=1 // pred_check_branch
      %96 = sbr.rel (0) target = $region37
    $region36: #{tpu_custom_call.1} parent=1 // pred_region
      _
    $region37: #{tpu_custom_call.1} parent=1 // pred_fallthru
      _
    // Predicated region
    $region38: #{tpu_custom_call.1} parent=1 // pred_check
      _
    $region39: #{tpu_custom_call.1} parent=1 // pred_check_branch
      %98 = sbr.rel (0) target = $region41
    $region40: #{tpu_custom_call.1} parent=1 // pred_region
      %s100 = ssub.s32 1024, 1024
      %101 = vsyncadd [#allocation12], %s100
      %s102 = sshll.u32 [#allocation13], 4
      %s103 = int_to_ptr.vmem [resolvable:$true] %s102
      %108 = dma.hbm_to_vmem [thread:$0]  %s9, 1024, %s103, [#allocation12], 64, 64, 4
    $region41: #{tpu_custom_call.1} parent=1 // pred_fallthru
      _
    // Predicated region
    $region42: #{tpu_custom_call.1} parent=1 // pred_check
      _
    $region43: #{tpu_custom_call.1} parent=1 // pred_check_branch
      %110 = sbr.rel (0) target = $region45
    $region44: #{tpu_custom_call.1} parent=1 // pred_region
      _
    $region45: #{tpu_custom_call.1} parent=1 // pred_fallthru
      _
    // Predicated region
    $region46: #{tpu_custom_call.1} parent=1 // pred_check
      _
    $region47: #{tpu_custom_call.1} parent=1 // pred_check_branch
      %112 = sbr.rel (0) target = $region49
    $region48: #{tpu_custom_call.1} parent=1 // pred_region
      %113 = dma.done [#allocation3], 64
    $region49: #{tpu_custom_call.1} parent=1 // pred_fallthru
      _
    // Predicated region
    $region50: #{tpu_custom_call.1} parent=1 // pred_check
      _
    $region51: #{tpu_custom_call.1} parent=1 // pred_check_branch
      %115 = sbr.rel (0) target = $region53
    $region52: #{tpu_custom_call.1} parent=1 // pred_region
      %116 = dma.done [#allocation6], 320
    $region53: #{tpu_custom_call.1} parent=1 // pred_fallthru
      _
    // Predicated region
    $region54: #{tpu_custom_call.1} parent=1 // pred_check
      _
    $region55: #{tpu_custom_call.1} parent=1 // pred_check_branch
      %118 = sbr.rel (0) target = $region57
    $region56: #{tpu_custom_call.1} parent=1 // pred_region
      %119 = dma.done [#allocation6], 1024
    $region57: #{tpu_custom_call.1} parent=1 // pred_fallthru
      _
    // Predicated region
    $region58: #{tpu_custom_call.1} parent=1 // pred_check
      _
    $region59: #{tpu_custom_call.1} parent=1 // pred_check_branch
      %121 = sbr.rel (0) target = $region61
    $region60: #{tpu_custom_call.1} parent=1 // pred_region
      %122 = dma.done [#allocation9], 1024
    $region61: #{tpu_custom_call.1} parent=1 // pred_fallthru
      _
    // Predicated region
    $region62: #{tpu_custom_call.1} parent=1 // pred_check
      _
    $region63: #{tpu_custom_call.1} parent=1 // pred_check_branch
      %124 = sbr.rel (0) target = $region65
    $region64: #{tpu_custom_call.1} parent=1 // pred_region
      %125 = dma.done [#allocation9], 1024
    $region65: #{tpu_custom_call.1} parent=1 // pred_fallthru
      _
    // Predicated region
    $region66: #{tpu_custom_call.1} parent=1 // pred_check
      _
    $region67: #{tpu_custom_call.1} parent=1 // pred_check_branch
      %127 = sbr.rel (0) target = $region69
    $region68: #{tpu_custom_call.1} parent=1 // pred_region
      %128 = dma.done [#allocation12], 1024
    $region69: #{tpu_custom_call.1} parent=1 // pred_fallthru
      _
    // Predicated region
    $region70: #{tpu_custom_call.1} parent=1 // pred_check
      _
    $region71: #{tpu_custom_call.1} parent=1 // pred_check_branch
      %130 = sbr.rel (0) target = $region73
    $region72: #{tpu_custom_call.1} parent=1 // pred_region
      %131 = dma.done [#allocation12], 1024
    $region73: #{tpu_custom_call.1} parent=1 // pred_fallthru
      _
    %v133 = vld [vmem:[#allocation2] sm:$0xf]
    %v134 = vld [vmem:[#allocation7] sm:$0xf]
    %v135 = vld [vmem:[#allocation7 + $0x4] sm:$0xf]
    %v136 = vld [vmem:[#allocation7 + $0x8] sm:$0xf]
    %v137 = vld [vmem:[#allocation7 + $0xc] sm:$0xf]
    %v138 = vld [vmem:[#allocation7 + $0x10] sm:$0xf]
    %v139 = vld [vmem:[#allocation7 + $0x14] sm:$0xf]
    %v140 = vld [vmem:[#allocation7 + $0x18] sm:$0xf]
    %v141 = vld [vmem:[#allocation7 + $0x1c] sm:$0xf]
    %v142 = vld [vmem:[#allocation7 + $0x20] sm:$0xf]
    %v143 = vld [vmem:[#allocation7 + $0x24] sm:$0xf]
    %v144 = vld [vmem:[#allocation7 + $0x28] sm:$0xf]
    %v145 = vld [vmem:[#allocation7 + $0x2c] sm:$0xf]
    %v146 = vld [vmem:[#allocation7 + $0x30] sm:$0xf]
    %v147 = vld [vmem:[#allocation7 + $0x34] sm:$0xf]
    %v148 = vld [vmem:[#allocation7 + $0x38] sm:$0xf]
    %v149 = vld [vmem:[#allocation7 + $0x3c] sm:$0xf]
    %v150 = vld [vmem:[%s4] sm:$0x1]
    %v152 = vlaneseq
    %v153 = vshrl.u32 %v152, 7
    %v154 = vsub.s32 0, %v153
    %v155 = vrot.slane %v150, %v154
    %v173 = vunpack.c.l.b16 %v134
    %v174 = vunpack.c.l.b16 %v135
    %v175 = vunpack.c.l.b16 %v136
    %v176 = vunpack.c.l.b16 %v137
    %v177 = vunpack.c.l.b16 %v138
    %v178 = vunpack.c.l.b16 %v139
    %v179 = vunpack.c.l.b16 %v140
    %v180 = vunpack.c.l.b16 %v141
    %v181 = vunpack.c.l.b16 %v142
    %v182 = vunpack.c.l.b16 %v143
    %v183 = vunpack.c.l.b16 %v144
    %v184 = vunpack.c.l.b16 %v145
    %v185 = vunpack.c.l.b16 %v146
    %v186 = vunpack.c.l.b16 %v147
    %v187 = vunpack.c.l.b16 %v148
    %v188 = vunpack.c.l.b16 %v149
    %v189 = vpack.c.b16 %v174, %v173
    %v190 = vpack.c.b16 %v176, %v175
    %v191 = vpack.c.b16 %v178, %v177
    %v192 = vpack.c.b16 %v180, %v179
    %v193 = vpack.c.b16 %v182, %v181
    %v194 = vpack.c.b16 %v184, %v183
    %v195 = vpack.c.b16 %v186, %v185
    %v196 = vpack.c.b16 %v188, %v187
    %205 = vmatprep.subr.bf16.mxu0 0
    %206 = vmatpush1.bf16.msra.mxu0 %v189
    %207 = vmatprep.subr.bf16.mxu0 0
    %208 = vmatpush1.bf16.msra.mxu0 %v190
    %209 = vmatprep.subr.bf16.mxu0 0
    %210 = vmatpush1.bf16.msra.mxu0 %v191
    %211 = vmatprep.subr.bf16.mxu0 0
    %212 = vmatpush1.bf16.msra.mxu0 %v192
    %213 = vmatprep.subr.bf16.mxu0 0
    %214 = vmatpush1.bf16.msra.mxu0 %v193
    %215 = vmatprep.subr.bf16.mxu0 0
    %216 = vmatpush1.bf16.msra.mxu0 %v194
    %217 = vmatprep.subr.bf16.mxu0 0
    %218 = vmatpush1.bf16.msra.mxu0 %v195
    %219 = vmatprep.subr.bf16.mxu0 0
    %220 = vmatpush1.bf16.msra.mxu0 %v196
    %221 = vmatprep.subr.bf16.mxu0 0
    %222 = vmatpush1.bf16.msra.mxu0 0
    %223 = vmatprep.subr.bf16.mxu0 0
    %224 = vmatpush1.bf16.msra.mxu0 0
    %225 = vmatprep.subr.bf16.mxu0 0
    %226 = vmatpush1.bf16.msra.mxu0 0
    %227 = vmatprep.subr.bf16.mxu0 0
    %228 = vmatpush1.bf16.msra.mxu0 0
    %229 = vmatprep.subr.bf16.mxu0 0
    %230 = vmatpush1.bf16.msra.mxu0 0
    %231 = vmatprep.subr.bf16.mxu0 0
    %232 = vmatpush1.bf16.msra.mxu0 0
    %233 = vmatprep.subr.bf16.mxu0 0
    %234 = vmatpush1.bf16.msra.mxu0 0
    %235 = vmatprep.subr.bf16.mxu0 0
    %236 = vmatpush1.bf16.msra.mxu0 0
    %237 = vmatprep.mubr.bf16.mxu0 0
    %238 = vmatmul.mubr.bf16.gmra.mrb[0].mxu0 %v133
    %v239 = vpop.f32.mrb[0].mxu0
    %v240 = vadd.f32 %v155, %v239
    %v241 = vpop.f32.mrb[0].mxu0
    %v242 = vpop.f32.mrb[0].mxu0
    %v243 = vpop.f32.mrb[0].mxu0
    %244 = vdwg.mxu0
    %v245 = vld [vmem:[#allocation5] sm:$0xf]
    %v246 = vld [vmem:[#allocation5 + $0x4] sm:$0xf]
    %v247 = vld [vmem:[#allocation5 + $0x8] sm:$0xf]
    %v248 = vld [vmem:[#allocation5 + $0xc] sm:$0xf]
    %v249 = vld [vmem:[#allocation5 + $0x10] sm:$0xf]
    %v250 = vld [vmem:[#allocation8] sm:$0xf]
    %v251 = vld [vmem:[#allocation8 + $0x4] sm:$0xf]
    %v252 = vld [vmem:[#allocation8 + $0x8] sm:$0xf]
    %v253 = vld [vmem:[#allocation8 + $0xc] sm:$0xf]
    %v254 = vld [vmem:[#allocation8 + $0x10] sm:$0xf]
    %v255 = vld [vmem:[#allocation8 + $0x14] sm:$0xf]
    %v256 = vld [vmem:[#allocation8 + $0x18] sm:$0xf]
    %v257 = vld [vmem:[#allocation8 + $0x1c] sm:$0xf]
    %v258 = vld [vmem:[#allocation8 + $0x20] sm:$0xf]
    %v259 = vld [vmem:[#allocation8 + $0x24] sm:$0xf]
    %v260 = vld [vmem:[#allocation8 + $0x28] sm:$0xf]
    %v261 = vld [vmem:[#allocation8 + $0x2c] sm:$0xf]
    %v262 = vld [vmem:[#allocation8 + $0x30] sm:$0xf]
    %v263 = vld [vmem:[#allocation8 + $0x34] sm:$0xf]
    %v264 = vld [vmem:[#allocation8 + $0x38] sm:$0xf]
    %v265 = vld [vmem:[#allocation8 + $0x3c] sm:$0xf]
    %v271 = vunpack.c.l.b16 %v245
    %v272 = vunpack.c.l.b16 %v246
    %v273 = vunpack.c.l.b16 %v247
    %v274 = vunpack.c.l.b16 %v248
    %v275 = vunpack.c.l.b16 %v249
    %v276 = vpack.c.b16 %v272, %v271
    %v277 = vpack.c.b16 %v274, %v273
    %v278 = vpack.c.b16 %v275, %v275
    %v298 = vunpack.c.l.b16 %v250
    %v299 = vunpack.c.l.b16 %v251
    %v300 = vunpack.c.l.b16 %v252
    %v301 = vunpack.c.l.b16 %v253
    %v302 = vunpack.c.l.b16 %v254
    %v303 = vunpack.c.l.b16 %v255
    %v304 = vunpack.c.l.b16 %v256
    %v305 = vunpack.c.l.b16 %v257
    %v306 = vunpack.c.l.b16 %v258
    %v307 = vunpack.c.l.b16 %v259
    %v308 = vunpack.c.l.b16 %v260
    %v309 = vunpack.c.l.b16 %v261
    %v310 = vunpack.c.l.b16 %v262
    %v311 = vunpack.c.l.b16 %v263
    %v312 = vunpack.c.l.b16 %v264
    %v313 = vunpack.c.l.b16 %v265
    %v314 = vpack.c.b16 %v299, %v298
    %v315 = vpack.c.b16 %v301, %v300
    %v316 = vpack.c.b16 %v303, %v302
    %v317 = vpack.c.b16 %v305, %v304
    %v318 = vpack.c.b16 %v307, %v306
    %v319 = vpack.c.b16 %v309, %v308
    %v320 = vpack.c.b16 %v311, %v310
    %v321 = vpack.c.b16 %v313, %v312
    %330 = vmatprep.subr.bf16.mxu0 0
    %331 = vmatpush1.bf16.msra.mxu0 %v314
    %332 = vmatprep.subr.bf16.mxu0 0
    %333 = vmatpush1.bf16.msra.mxu0 %v315
    %334 = vmatprep.subr.bf16.mxu0 0
    %335 = vmatpush1.bf16.msra.mxu0 %v316
    %336 = vmatprep.subr.bf16.mxu0 0
    %337 = vmatpush1.bf16.msra.mxu0 %v317
    %338 = vmatprep.subr.bf16.mxu0 0
    %339 = vmatpush1.bf16.msra.mxu0 %v318
    %340 = vmatprep.subr.bf16.mxu0 0
    %341 = vmatpush1.bf16.msra.mxu0 %v319
    %342 = vmatprep.subr.bf16.mxu0 0
    %343 = vmatpush1.bf16.msra.mxu0 %v320
    %344 = vmatprep.subr.bf16.mxu0 0
    %345 = vmatpush1.bf16.msra.mxu0 %v321
    %346 = vmatprep.subr.bf16.mxu0 0
    %347 = vmatpush1.bf16.msra.mxu0 0
    %348 = vmatprep.subr.bf16.mxu0 0
    %349 = vmatpush1.bf16.msra.mxu0 0
    %350 = vmatprep.subr.bf16.mxu0 0
    %351 = vmatpush1.bf16.msra.mxu0 0
    %352 = vmatprep.subr.bf16.mxu0 0
    %353 = vmatpush1.bf16.msra.mxu0 0
    %354 = vmatprep.subr.bf16.mxu0 0
    %355 = vmatpush1.bf16.msra.mxu0 0
    %356 = vmatprep.subr.bf16.mxu0 0
    %357 = vmatpush1.bf16.msra.mxu0 0
    %358 = vmatprep.subr.bf16.mxu0 0
    %359 = vmatpush1.bf16.msra.mxu0 0
    %360 = vmatprep.subr.bf16.mxu0 0
    %361 = vmatpush1.bf16.msra.mxu0 0
    %362 = vmatprep.mubr.bf16.mxu0 0
    %363 = vmatmul.mubr.bf16.gmra.mrb[0].mxu0 %v276
    %v364 = vpop.f32.mrb[0].mxu0
    %v365 = vadd.f32 0.0, %v364
    %v366 = vpop.f32.mrb[0].mxu0
    %v367 = vpop.f32.mrb[0].mxu0
    %v368 = vadd.f32 0.0, %v367
    %v369 = vpop.f32.mrb[0].mxu0
    %370 = vmatprep.mubr.bf16.mxu0 0
    %371 = vmatmul.mubr.bf16.gmra.mrb[0].mxu0 %v277
    %v372 = vpop.f32.mrb[0].mxu0
    %v373 = vadd.f32 0.0, %v372
    %v374 = vpop.f32.mrb[0].mxu0
    %v375 = vpop.f32.mrb[0].mxu0
    %v376 = vadd.f32 0.0, %v375
    %v377 = vpop.f32.mrb[0].mxu0
    %378 = vmatprep.mubr.bf16.mxu0 0
    %379 = vmatmul.mubr.bf16.gmra.mrb[0].mxu0 %v278
    %v380 = vpop.f32.mrb[0].mxu0
    %v381 = vadd.f32 0.0, %v380
    %v382 = vpop.f32.mrb[0].mxu0
    %v383 = vpop.f32.mrb[0].mxu0
    %v384 = vpop.f32.mrb[0].mxu0
    %385 = vdwg.mxu0
    %v386 = vadd.f32 %v365, %v240
    %v387 = vadd.f32 %v368, %v240
    %v388 = vadd.f32 %v373, %v240
    %v389 = vadd.f32 %v376, %v240
    %v390 = vadd.f32 %v381, %v240
    %v391 = vmax.f32 %v386, 0.0
    %v392 = vmax.f32 %v387, 0.0
    %v393 = vmax.f32 %v388, 0.0
    %v394 = vmax.f32 %v389, 0.0
    %v395 = vmax.f32 %v390, 0.0
    %v396 = vpack.c.bf16 %v392, %v391
    %v397 = vpack.c.bf16 %v394, %v393
    %v398 = vpack.c.bf16 %v395, %v395
    %v399 = vld [vmem:[#allocation10] sm:$0xf]
    %v400 = vld [vmem:[#allocation10 + $0x4] sm:$0xf]
    %v401 = vld [vmem:[#allocation10 + $0x8] sm:$0xf]
    %v402 = vld [vmem:[#allocation10 + $0xc] sm:$0xf]
    %v403 = vld [vmem:[#allocation10 + $0x10] sm:$0xf]
    %v404 = vld [vmem:[#allocation10 + $0x14] sm:$0xf]
    %v405 = vld [vmem:[#allocation10 + $0x18] sm:$0xf]
    %v406 = vld [vmem:[#allocation10 + $0x1c] sm:$0xf]
    %v407 = vld [vmem:[#allocation10 + $0x20] sm:$0xf]
    %v408 = vld [vmem:[#allocation10 + $0x24] sm:$0xf]
    %v409 = vld [vmem:[#allocation10 + $0x28] sm:$0xf]
    %v410 = vld [vmem:[#allocation10 + $0x2c] sm:$0xf]
    %v411 = vld [vmem:[#allocation10 + $0x30] sm:$0xf]
    %v412 = vld [vmem:[#allocation10 + $0x34] sm:$0xf]
    %v413 = vld [vmem:[#allocation10 + $0x38] sm:$0xf]
    %v414 = vld [vmem:[#allocation10 + $0x3c] sm:$0xf]
    %v415 = vld [vmem:[%s6] sm:$0x1]
    %v417 = vlaneseq
    %v418 = vshrl.u32 %v417, 7
    %v419 = vsub.s32 0, %v418
    %v420 = vrot.slane %v415, %v419
    %v438 = vunpack.c.l.b16 %v399
    %v439 = vunpack.c.l.b16 %v400
    %v440 = vunpack.c.l.b16 %v401
    %v441 = vunpack.c.l.b16 %v402
    %v442 = vunpack.c.l.b16 %v403
    %v443 = vunpack.c.l.b16 %v404
    %v444 = vunpack.c.l.b16 %v405
    %v445 = vunpack.c.l.b16 %v406
    %v446 = vunpack.c.l.b16 %v407
    %v447 = vunpack.c.l.b16 %v408
    %v448 = vunpack.c.l.b16 %v409
    %v449 = vunpack.c.l.b16 %v410
    %v450 = vunpack.c.l.b16 %v411
    %v451 = vunpack.c.l.b16 %v412
    %v452 = vunpack.c.l.b16 %v413
    %v453 = vunpack.c.l.b16 %v414
    %v454 = vpack.c.b16 %v439, %v438
    %v455 = vpack.c.b16 %v441, %v440
    %v456 = vpack.c.b16 %v443, %v442
    %v457 = vpack.c.b16 %v445, %v444
    %v458 = vpack.c.b16 %v447, %v446
    %v459 = vpack.c.b16 %v449, %v448
    %v460 = vpack.c.b16 %v451, %v450
    %v461 = vpack.c.b16 %v453, %v452
    %470 = vmatprep.subr.bf16.mxu0 0
    %471 = vmatpush1.bf16.msra.mxu0 %v454
    %472 = vmatprep.subr.bf16.mxu0 0
    %473 = vmatpush1.bf16.msra.mxu0 %v455
    %474 = vmatprep.subr.bf16.mxu0 0
    %475 = vmatpush1.bf16.msra.mxu0 %v456
    %476 = vmatprep.subr.bf16.mxu0 0
    %477 = vmatpush1.bf16.msra.mxu0 %v457
    %478 = vmatprep.subr.bf16.mxu0 0
    %479 = vmatpush1.bf16.msra.mxu0 %v458
    %480 = vmatprep.subr.bf16.mxu0 0
    %481 = vmatpush1.bf16.msra.mxu0 %v459
    %482 = vmatprep.subr.bf16.mxu0 0
    %483 = vmatpush1.bf16.msra.mxu0 %v460
    %484 = vmatprep.subr.bf16.mxu0 0
    %485 = vmatpush1.bf16.msra.mxu0 %v461
    %486 = vmatprep.subr.bf16.mxu0 0
    %487 = vmatpush1.bf16.msra.mxu0 0
    %488 = vmatprep.subr.bf16.mxu0 0
    %489 = vmatpush1.bf16.msra.mxu0 0
    %490 = vmatprep.subr.bf16.mxu0 0
    %491 = vmatpush1.bf16.msra.mxu0 0
    %492 = vmatprep.subr.bf16.mxu0 0
    %493 = vmatpush1.bf16.msra.mxu0 0
    %494 = vmatprep.subr.bf16.mxu0 0
    %495 = vmatpush1.bf16.msra.mxu0 0
    %496 = vmatprep.subr.bf16.mxu0 0
    %497 = vmatpush1.bf16.msra.mxu0 0
    %498 = vmatprep.subr.bf16.mxu0 0
    %499 = vmatpush1.bf16.msra.mxu0 0
    %500 = vmatprep.subr.bf16.mxu0 0
    %501 = vmatpush1.bf16.msra.mxu0 0
    %502 = vmatprep.mubr.bf16.mxu0 0
    %503 = vmatmul.mubr.bf16.gmra.mrb[0].mxu0 %v396
    %v504 = vpop.f32.mrb[0].mxu0
    %v505 = vadd.f32 %v420, %v504
    %v506 = vpop.f32.mrb[0].mxu0
    %v507 = vpop.f32.mrb[0].mxu0
    %v508 = vadd.f32 %v420, %v507
    %v509 = vpop.f32.mrb[0].mxu0
    %510 = vmatprep.mubr.bf16.mxu0 0
    %511 = vmatmul.mubr.bf16.gmra.mrb[0].mxu0 %v397
    %v512 = vpop.f32.mrb[0].mxu0
    %v513 = vadd.f32 %v420, %v512
    %v514 = vpop.f32.mrb[0].mxu0
    %v515 = vpop.f32.mrb[0].mxu0
    %v516 = vadd.f32 %v420, %v515
    %v517 = vpop.f32.mrb[0].mxu0
    %518 = vmatprep.mubr.bf16.mxu0 0
    %519 = vmatmul.mubr.bf16.gmra.mrb[0].mxu0 %v398
    %v520 = vpop.f32.mrb[0].mxu0
    %v521 = vadd.f32 %v420, %v520
    %v522 = vpop.f32.mrb[0].mxu0
    %v523 = vpop.f32.mrb[0].mxu0
    %v524 = vpop.f32.mrb[0].mxu0
    %525 = vdwg.mxu0
    %v526 = vmax.f32 %v505, 0.0
    %v527 = vmax.f32 %v508, 0.0
    %v528 = vmax.f32 %v513, 0.0
    %v529 = vmax.f32 %v516, 0.0
    %v530 = vmax.f32 %v521, 0.0
    %v531 = vpack.c.bf16 %v527, %v526
    %v532 = vpack.c.bf16 %v529, %v528
    %v533 = vpack.c.bf16 %v530, %v530
    %v534 = vld [vmem:[#allocation11] sm:$0xf]
    %v535 = vld [vmem:[#allocation11 + $0x4] sm:$0xf]
    %v536 = vld [vmem:[#allocation11 + $0x8] sm:$0xf]
    %v537 = vld [vmem:[#allocation11 + $0xc] sm:$0xf]
    %v538 = vld [vmem:[#allocation11 + $0x10] sm:$0xf]
    %v539 = vld [vmem:[#allocation11 + $0x14] sm:$0xf]
    %v540 = vld [vmem:[#allocation11 + $0x18] sm:$0xf]
    %v541 = vld [vmem:[#allocation11 + $0x1c] sm:$0xf]
    %v542 = vld [vmem:[#allocation11 + $0x20] sm:$0xf]
    %v543 = vld [vmem:[#allocation11 + $0x24] sm:$0xf]
    %v544 = vld [vmem:[#allocation11 + $0x28] sm:$0xf]
    %v545 = vld [vmem:[#allocation11 + $0x2c] sm:$0xf]
    %v546 = vld [vmem:[#allocation11 + $0x30] sm:$0xf]
    %v547 = vld [vmem:[#allocation11 + $0x34] sm:$0xf]
    %v548 = vld [vmem:[#allocation11 + $0x38] sm:$0xf]
    %v549 = vld [vmem:[#allocation11 + $0x3c] sm:$0xf]
    %v550 = vld [vmem:[%s8] sm:$0x1]
    %v552 = vlaneseq
    %v553 = vshrl.u32 %v552, 7
    %v554 = vsub.s32 0, %v553
    %v555 = vrot.slane %v550, %v554
    %v573 = vunpack.c.l.b16 %v534
    %v574 = vunpack.c.l.b16 %v535
    %v575 = vunpack.c.l.b16 %v536
    %v576 = vunpack.c.l.b16 %v537
    %v577 = vunpack.c.l.b16 %v538
    %v578 = vunpack.c.l.b16 %v539
    %v579 = vunpack.c.l.b16 %v540
    %v580 = vunpack.c.l.b16 %v541
    %v581 = vunpack.c.l.b16 %v542
    %v582 = vunpack.c.l.b16 %v543
    %v583 = vunpack.c.l.b16 %v544
    %v584 = vunpack.c.l.b16 %v545
    %v585 = vunpack.c.l.b16 %v546
    %v586 = vunpack.c.l.b16 %v547
    %v587 = vunpack.c.l.b16 %v548
    %v588 = vunpack.c.l.b16 %v549
    %v589 = vpack.c.b16 %v574, %v573
    %v590 = vpack.c.b16 %v576, %v575
    %v591 = vpack.c.b16 %v578, %v577
    %v592 = vpack.c.b16 %v580, %v579
    %v593 = vpack.c.b16 %v582, %v581
    %v594 = vpack.c.b16 %v584, %v583
    %v595 = vpack.c.b16 %v586, %v585
    %v596 = vpack.c.b16 %v588, %v587
    %605 = vmatprep.subr.bf16.mxu0 0
    %606 = vmatpush1.bf16.msra.mxu0 %v589
    %607 = vmatprep.subr.bf16.mxu0 0
    %608 = vmatpush1.bf16.msra.mxu0 %v590
    %609 = vmatprep.subr.bf16.mxu0 0
    %610 = vmatpush1.bf16.msra.mxu0 %v591
    %611 = vmatprep.subr.bf16.mxu0 0
    %612 = vmatpush1.bf16.msra.mxu0 %v592
    %613 = vmatprep.subr.bf16.mxu0 0
    %614 = vmatpush1.bf16.msra.mxu0 %v593
    %615 = vmatprep.subr.bf16.mxu0 0
    %616 = vmatpush1.bf16.msra.mxu0 %v594
    %617 = vmatprep.subr.bf16.mxu0 0
    %618 = vmatpush1.bf16.msra.mxu0 %v595
    %619 = vmatprep.subr.bf16.mxu0 0
    %620 = vmatpush1.bf16.msra.mxu0 %v596
    %621 = vmatprep.subr.bf16.mxu0 0
    %622 = vmatpush1.bf16.msra.mxu0 0
    %623 = vmatprep.subr.bf16.mxu0 0
    %624 = vmatpush1.bf16.msra.mxu0 0
    %625 = vmatprep.subr.bf16.mxu0 0
    %626 = vmatpush1.bf16.msra.mxu0 0
    %627 = vmatprep.subr.bf16.mxu0 0
    %628 = vmatpush1.bf16.msra.mxu0 0
    %629 = vmatprep.subr.bf16.mxu0 0
    %630 = vmatpush1.bf16.msra.mxu0 0
    %631 = vmatprep.subr.bf16.mxu0 0
    %632 = vmatpush1.bf16.msra.mxu0 0
    %633 = vmatprep.subr.bf16.mxu0 0
    %634 = vmatpush1.bf16.msra.mxu0 0
    %635 = vmatprep.subr.bf16.mxu0 0
    %636 = vmatpush1.bf16.msra.mxu0 0
    %637 = vmatprep.mubr.bf16.mxu0 0
    %638 = vmatmul.mubr.bf16.gmra.mrb[0].mxu0 %v531
    %v639 = vpop.f32.mrb[0].mxu0
    %v640 = vadd.f32 %v555, %v639
    %v641 = vpop.f32.mrb[0].mxu0
    %v642 = vpop.f32.mrb[0].mxu0
    %v643 = vadd.f32 %v555, %v642
    %v644 = vpop.f32.mrb[0].mxu0
    %645 = vmatprep.mubr.bf16.mxu0 0
    %646 = vmatmul.mubr.bf16.gmra.mrb[0].mxu0 %v532
    %v647 = vpop.f32.mrb[0].mxu0
    %v648 = vadd.f32 %v555, %v647
    %v649 = vpop.f32.mrb[0].mxu0
    %v650 = vpop.f32.mrb[0].mxu0
    %v651 = vadd.f32 %v555, %v650
    %v652 = vpop.f32.mrb[0].mxu0
    %653 = vmatprep.mubr.bf16.mxu0 0
    %654 = vmatmul.mubr.bf16.gmra.mrb[0].mxu0 %v533
    %v655 = vpop.f32.mrb[0].mxu0
    %v656 = vadd.f32 %v555, %v655
    %v657 = vpop.f32.mrb[0].mxu0
    %v658 = vpop.f32.mrb[0].mxu0
    %v659 = vpop.f32.mrb[0].mxu0
    %660 = vdwg.mxu0
    %v661 = vmax.f32 %v640, 0.0
    %v662 = vmax.f32 %v643, 0.0
    %v663 = vmax.f32 %v648, 0.0
    %v664 = vmax.f32 %v651, 0.0
    %v665 = vmax.f32 %v656, 0.0
    %v666 = vpack.c.bf16 %v662, %v661
    %v667 = vpack.c.bf16 %v664, %v663
    %v668 = vpack.c.bf16 %v665, %v665
    %v669 = vld [vmem:[#allocation13] sm:$0xf]
    %v670 = vld [vmem:[#allocation13 + $0x4] sm:$0xf]
    %v671 = vld [vmem:[#allocation13 + $0x8] sm:$0xf]
    %v672 = vld [vmem:[#allocation13 + $0xc] sm:$0xf]
    %v673 = vld [vmem:[#allocation13 + $0x10] sm:$0xf]
    %v674 = vld [vmem:[#allocation13 + $0x14] sm:$0xf]
    %v675 = vld [vmem:[#allocation13 + $0x18] sm:$0xf]
    %v676 = vld [vmem:[#allocation13 + $0x1c] sm:$0xf]
    %v677 = vld [vmem:[#allocation13 + $0x20] sm:$0xf]
    %v678 = vld [vmem:[#allocation13 + $0x24] sm:$0xf]
    %v679 = vld [vmem:[#allocation13 + $0x28] sm:$0xf]
    %v680 = vld [vmem:[#allocation13 + $0x2c] sm:$0xf]
    %v681 = vld [vmem:[#allocation13 + $0x30] sm:$0xf]
    %v682 = vld [vmem:[#allocation13 + $0x34] sm:$0xf]
    %v683 = vld [vmem:[#allocation13 + $0x38] sm:$0xf]
    %v684 = vld [vmem:[#allocation13 + $0x3c] sm:$0xf]
    %v685 = vld [vmem:[%s10] sm:$0x1]
    %v687 = vlaneseq
    %v688 = vshrl.u32 %v687, 7
    %v689 = vsub.s32 0, %v688
    %v690 = vrot.slane %v685, %v689
    %v708 = vunpack.c.l.b16 %v669
    %v709 = vunpack.c.l.b16 %v670
    %v710 = vunpack.c.l.b16 %v671
    %v711 = vunpack.c.l.b16 %v672
    %v712 = vunpack.c.l.b16 %v673
    %v713 = vunpack.c.l.b16 %v674
    %v714 = vunpack.c.l.b16 %v675
    %v715 = vunpack.c.l.b16 %v676
    %v716 = vunpack.c.l.b16 %v677
    %v717 = vunpack.c.l.b16 %v678
    %v718 = vunpack.c.l.b16 %v679
    %v719 = vunpack.c.l.b16 %v680
    %v720 = vunpack.c.l.b16 %v681
    %v721 = vunpack.c.l.b16 %v682
    %v722 = vunpack.c.l.b16 %v683
    %v723 = vunpack.c.l.b16 %v684
    %v724 = vpack.c.b16 %v709, %v708
    %v725 = vpack.c.b16 %v711, %v710
    %v726 = vpack.c.b16 %v713, %v712
    %v727 = vpack.c.b16 %v715, %v714
    %v728 = vpack.c.b16 %v717, %v716
    %v729 = vpack.c.b16 %v719, %v718
    %v730 = vpack.c.b16 %v721, %v720
    %v731 = vpack.c.b16 %v723, %v722
    %740 = vmatprep.subr.bf16.mxu0 0
    %741 = vmatpush1.bf16.msra.mxu0 %v724
    %742 = vmatprep.subr.bf16.mxu0 0
    %743 = vmatpush1.bf16.msra.mxu0 %v725
    %744 = vmatprep.subr.bf16.mxu0 0
    %745 = vmatpush1.bf16.msra.mxu0 %v726
    %746 = vmatprep.subr.bf16.mxu0 0
    %747 = vmatpush1.bf16.msra.mxu0 %v727
    %748 = vmatprep.subr.bf16.mxu0 0
    %749 = vmatpush1.bf16.msra.mxu0 %v728
    %750 = vmatprep.subr.bf16.mxu0 0
    %751 = vmatpush1.bf16.msra.mxu0 %v729
    %752 = vmatprep.subr.bf16.mxu0 0
    %753 = vmatpush1.bf16.msra.mxu0 %v730
    %754 = vmatprep.subr.bf16.mxu0 0
    %755 = vmatpush1.bf16.msra.mxu0 %v731
    %756 = vmatprep.subr.bf16.mxu0 0
    %757 = vmatpush1.bf16.msra.mxu0 0
    %758 = vmatprep.subr.bf16.mxu0 0
    %759 = vmatpush1.bf16.msra.mxu0 0
    %760 = vmatprep.subr.bf16.mxu0 0
    %761 = vmatpush1.bf16.msra.mxu0 0
    %762 = vmatprep.subr.bf16.mxu0 0
    %763 = vmatpush1.bf16.msra.mxu0 0
    %764 = vmatprep.subr.bf16.mxu0 0
    %765 = vmatpush1.bf16.msra.mxu0 0
    %766 = vmatprep.subr.bf16.mxu0 0
    %767 = vmatpush1.bf16.msra.mxu0 0
    %768 = vmatprep.subr.bf16.mxu0 0
    %769 = vmatpush1.bf16.msra.mxu0 0
    %770 = vmatprep.subr.bf16.mxu0 0
    %771 = vmatpush1.bf16.msra.mxu0 0
    %772 = vmatprep.mubr.bf16.mxu0 0
    %773 = vmatmul.mubr.bf16.gmra.mrb[0].mxu0 %v666
    %v774 = vpop.f32.mrb[0].mxu0
    %v775 = vadd.f32 %v690, %v774
    %v776 = vpop.f32.mrb[0].mxu0
    %v777 = vpop.f32.mrb[0].mxu0
    %v778 = vadd.f32 %v690, %v777
    %v779 = vpop.f32.mrb[0].mxu0
    %780 = vmatprep.mubr.bf16.mxu0 0
    %781 = vmatmul.mubr.bf16.gmra.mrb[0].mxu0 %v667
    %v782 = vpop.f32.mrb[0].mxu0
    %v783 = vadd.f32 %v690, %v782
    %v784 = vpop.f32.mrb[0].mxu0
    %v785 = vpop.f32.mrb[0].mxu0
    %v786 = vadd.f32 %v690, %v785
    %v787 = vpop.f32.mrb[0].mxu0
    %788 = vmatprep.mubr.bf16.mxu0 0
    %789 = vmatmul.mubr.bf16.gmra.mrb[0].mxu0 %v668
    %v790 = vpop.f32.mrb[0].mxu0
    %v791 = vadd.f32 %v690, %v790
    %v792 = vpop.f32.mrb[0].mxu0
    %v793 = vpop.f32.mrb[0].mxu0
    %v794 = vpop.f32.mrb[0].mxu0
    %795 = vdwg.mxu0
    %796 = vst [vmem:[#allocation14] sm:$0xff] %v775
    %797 = vst [vmem:[#allocation14 + $0x8] sm:$0xff] %v778
    %798 = vst [vmem:[#allocation14 + $0x10] sm:$0xff] %v783
    %799 = vst [vmem:[#allocation14 + $0x18] sm:$0xff] %v786
    %800 = vst [vmem:[#allocation14 + $0x20] sm:$0xff] %v791
    // Predicated region
    $region74: #{tpu_custom_call.1} parent=1 // pred_check
      _
    $region75: #{tpu_custom_call.1} parent=1 // pred_check_branch
      %802 = sbr.rel (0) target = $region77
    $region76: #{tpu_custom_call.1} parent=1 // pred_region
      %s804 = ssub.s32 640, 640
      %805 = vsyncadd [#allocation4], %s804
      %s807 = sshll.u32 [#allocation14], 4
      %s808 = int_to_ptr.vmem [resolvable:$true] %s807
      %810 = dma.vmem_to_hbm [thread:$0]  %s808, 640, %s11, [#allocation4]
    $region77: #{tpu_custom_call.1} parent=1 // pred_fallthru
      _
    // Predicated region
    $region78: #{tpu_custom_call.1} parent=1 // pred_check
      _
    $region79: #{tpu_custom_call.1} parent=1 // pred_check_branch
      %812 = sbr.rel (0) target = $region81
    $region80: #{tpu_custom_call.1} parent=1 // pred_region
      %813 = dma.done [#allocation4], 640
    $region81: #{tpu_custom_call.1} parent=1 // pred_fallthru
      _
    %814 = vsyncpa [#allocation3], 1
    %815 = vsyncpa [#allocation6], 1
    %816 = vsyncpa [#allocation9], 1
    %817 = vsyncpa [#allocation12], 1
    %818 = vsyncpa [#allocation4], 1

</llo_original>
